<compile_context>
chip_gen: v5e
topology: v5e:2x2
jax: 0.10.0
libtpu: 0.0.40
codegen_flags: <defaults>
</compile_context>

<pallas_src>
import functools

import jax
import jax.numpy as jnp
from jax.experimental import pallas as pl
from jax.experimental.pallas import tpu as pltpu

LN_EPS = 1e-5
INF = 1e9                      # FastFold hardcodes 1e9 in the padding bias
USE_APPROX_RECIPROCAL = True   # exact-division fallback for parity tests


# ----------------------------------------------------------------------------
# Small helpers
# ----------------------------------------------------------------------------
def _layernorm(x, gamma, beta):
    mu = jnp.mean(x, axis=-1, keepdims=True)
    var = jnp.mean(jnp.square(x - mu), axis=-1, keepdims=True)
    return (x - mu) * jax.lax.rsqrt(var + LN_EPS) * gamma + beta


def _full_spec(a):
    """Whole-array (untiled) BlockSpec for small weight/bias operands."""
    return pl.BlockSpec(a.shape, lambda *_, nd=a.ndim: (0,) * nd)


def _round_up(x, m):
    return ((x + m - 1) // m) * m


def _pick_tile(n, target, align=8):
    """Largest multiple-of-`align` divisor of n that is <= target, else n."""
    if n <= target:
        return n
    t = (target // align) * align
    while t >= align:
        if n % t == 0:
            return t
        t -= align
    return n


@functools.lru_cache(maxsize=None)
def _vmem_limit_bytes():
    """Per-generation scoped-VMEM budget (None -> compiler default)."""
    try:
        kind = jax.devices()[0].device_kind.lower()
    except Exception:
        return None
    if any(g in kind for g in ("v4", "v5", "v6")):
        return 96 * 1024 * 1024       # 128 MiB VMEM parts: deeper pipelining
    if "v7" in kind:
        return 40 * 1024 * 1024       # 64 MiB VMEM parts: leave headroom
    return None


def _cparams(sem):
    lim = _vmem_limit_bytes()
    if lim is None:
        return pltpu.CompilerParams(dimension_semantics=sem)
    return pltpu.CompilerParams(dimension_semantics=sem, vmem_limit_bytes=lim)


def _softmax_normalize(p, denom):
    if USE_APPROX_RECIPROCAL:
        return p * pl.reciprocal(denom, approx=True)   # EUP divide
    return p / denom


# ----------------------------------------------------------------------------
# Capability probe: the optimized layouts need in-kernel minor-dim permutes,
# trailing-dim merges and transposed-lhs matmuls.  Probe once; fall back to
# the previously-validated conservative paths if the toolchain rejects them.
# ----------------------------------------------------------------------------
def _probe_kernel(x_ref, w_ref, a_ref, b_ref):
    x = x_ref[...]                                   # (4, 16, 8) f32
    a_ref[...] = jnp.transpose(x, (1, 0, 2))         # leading-dims permute
    y = jnp.transpose(x, (2, 0, 1))                  # minor -> major permute
    y2 = y.reshape(8, 64)                            # merge trailing dims
    b_ref[...] = jax.lax.dot_general(                # transposed-lhs matmul
        y2, w_ref[...], (((0,), (0,)), ((), ())),
        preferred_element_type=jnp.float32)


@functools.lru_cache(maxsize=None)
def _fancy_layout_ok():
    try:
        x = jnp.arange(4 * 16 * 8, dtype=jnp.float32).reshape(4, 16, 8)
        w = jnp.arange(8 * 16, dtype=jnp.float32).reshape(8, 16) * 0.01
        a, b = pl.pallas_call(
            _probe_kernel,
            out_shape=(jax.ShapeDtypeStruct((16, 4, 8), jnp.float32),
                       jax.ShapeDtypeStruct((64, 16), jnp.float32)),
        )(x, w)
        ra = jnp.transpose(x, (1, 0, 2))
        rb = jnp.transpose(x, (2, 0, 1)).reshape(8, 64).T @ w
        return bool(jnp.allclose(a, ra)) and bool(jnp.allclose(b, rb,
                                                               rtol=1e-4))
    except Exception:
        return False


# ----------------------------------------------------------------------------
# Triangle attention (starting-node math; ending node = transposed variant)
# ----------------------------------------------------------------------------
def _tri_bias_kernel(z_ref, lng_ref, lnb_ref, wb_ref, out_ref, *, transposed):
    """Head-major triangle bias proj_b(LN(z)), tiled over the query axis."""
    zin = z_ref[0]
    z = jnp.transpose(zin, (1, 0, 2)) if transposed else zin    # (TI, N, C)
    ti, n, c = z.shape
    zf = z.reshape(ti * n, c)
    xn = _layernorm(zf, lng_ref[...], lnb_ref[...])
    bb = jnp.dot(xn.astype(jnp.bfloat16), wb_ref[...],
                 preferred_element_type=jnp.float32)            # (TI*N, H)
    bb3 = bb.reshape(ti, n, -1)
    for h in range(out_ref.shape[1]):                           # lane-dense
        out_ref[0, h] = bb3[:, :, h].astype(out_ref.dtype)      # stores


def _tri_attn_kernel(z_ref, m_ref, bias_ref, lng_ref, lnb_ref, wqkvg_ref,
                     bg_ref, wo_ref, ob_ref, out_ref, *, n_head, c_hidden,
                     transposed):
    zin = z_ref[0]                                  # (TI,N,C) or (N,TI,C)
    z = jnp.transpose(zin, (1, 0, 2)) if transposed else zin    # (TI, N, C)
    m = m_ref[0]                                    # (TI, N) key mask
    bias = bias_ref[0].astype(jnp.float32)          # (H, N, N) head-major
    ti, n, c = z.shape
    hc = n_head * c_hidden
    zf = z.reshape(ti * n, c)

    xn = _layernorm(zf, lng_ref[...], lnb_ref[...])
    xb = xn.astype(jnp.bfloat16)
    # Single fused [q | k | v | gate] projection (bf16 MXU, f32 accumulate).
    qkvg = jnp.dot(xb, wqkvg_ref[...], preferred_element_type=jnp.float32)
    q3 = qkvg[:, 0 * hc:1 * hc].reshape(ti, n, hc)
    k3 = qkvg[:, 1 * hc:2 * hc].reshape(ti, n, hc)
    v3 = qkvg[:, 2 * hc:3 * hc].reshape(ti, n, hc)
    g = jax.nn.sigmoid(qkvg[:, 3 * hc:4 * hc] + bg_ref[...])    # (TI*N, hc)

    mask_bias = (INF * (m - 1.0))[:, None, :]       # hoisted out of head loop
    scale = c_hidden ** -0.5

    head_outs = []
    for h in range(n_head):
        sl = slice(h * c_hidden, (h + 1) * c_hidden)
        qh = (q3[:, :, sl] * scale).astype(jnp.bfloat16)        # (TI, Q, d)
        kh = k3[:, :, sl].astype(jnp.bfloat16)                  # (TI, K, d)
        vh = v3[:, :, sl].astype(jnp.bfloat16)                  # (TI, K, d)
        logits = jax.lax.dot_general(
            qh, kh, (((2,), (2,)), ((0,), (0,))),
            preferred_element_type=jnp.float32)                 # (TI, Q, K)
        logits = logits + mask_bias + bias[h][None, :, :]
        lmax = jnp.max(logits, axis=-1, keepdims=True)
        p = jnp.exp(logits - lmax)
        denom = jnp.sum(p, axis=-1, keepdims=True)
        p = _softmax_normalize(p, denom)
        oh = jax.lax.dot_general(
            p.astype(jnp.bfloat16), vh, (((2,), (1,)), ((0,), (0,))),
            preferred_element_type=jnp.float32)                 # (TI, Q, d)
        head_outs.append(oh)

    o = jnp.concatenate(head_outs, axis=-1).reshape(ti * n, hc)
    o = (o * g).astype(jnp.bfloat16)                            # gating
    o = jnp.dot(o, wo_ref[...], preferred_element_type=jnp.float32)
    delta = (o + ob_ref[...]).reshape(ti, n, c)
    if transposed:
        out_ref[0] = zin + jnp.transpose(delta, (1, 0, 2))
    else:
        out_ref[0] = zin + delta


def tri_attention(z, mask, p, *, n_head, c_hidden, transposed=False,
                  row_tile=8):
    """Triangle attention.  `transposed=True` runs the ending-node variant
    directly over the second residue axis via transposed BlockSpecs and
    in-VMEM tile transposes (mask must already be in the attention frame)."""
    B, N, _, C = z.shape
    ti = _pick_tile(N, row_tile, 8)
    grid = (B, N // ti)

    if transposed:
        z_spec = pl.BlockSpec((1, N, ti, C), lambda b, i: (b, 0, i, 0))
    else:
        z_spec = pl.BlockSpec((1, ti, N, C), lambda b, i: (b, i, 0, 0))
    m_spec = pl.BlockSpec((1, ti, N), lambda b, i: (b, i, 0))

    # Pass 1: head-major (B, H, N, N) bf16 triangle bias.
    bias = pl.pallas_call(
        functools.partial(_tri_bias_kernel, transposed=transposed),
        out_shape=jax.ShapeDtypeStruct((B, n_head, N, N), jnp.bfloat16),
        grid=grid,
        in_specs=[z_spec, _full_spec(p['ln_g']), _full_spec(p['ln_b']),
                  _full_spec(p['w_b'])],
        out_specs=pl.BlockSpec((1, n_head, ti, N), lambda b, i: (b, 0, i, 0)),
        compiler_params=_cparams(("parallel", "parallel")),
    )(z, p['ln_g'], p['ln_b'], p['w_b'])

    # Pass 2: row-tiled attention with a single fused projection matmul.
    kern = functools.partial(_tri_attn_kernel, n_head=n_head,
                             c_hidden=c_hidden, transposed=transposed)
    return pl.pallas_call(
        kern,
        out_shape=jax.ShapeDtypeStruct((B, N, N, C), jnp.float32),
        grid=grid,
        in_specs=[z_spec, m_spec,
                  pl.BlockSpec((1, n_head, N, N), lambda b, i: (b, 0, 0, 0)),
                  _full_spec(p['ln_g']), _full_spec(p['ln_b']),
                  _full_spec(p['w_qkvg']), _full_spec(p['b_g']),
                  _full_spec(p['w_o']), _full_spec(p['out_b'])],
        out_specs=z_spec,
        compiler_params=_cparams(("parallel", "parallel")),
    )(z, mask, bias, p['ln_g'], p['ln_b'], p['w_qkvg'], p['b_g'],
      p['w_o'], p['out_b'])


# ----------------------------------------------------------------------------
# Triangle multiplicative update (outgoing / incoming)
# ----------------------------------------------------------------------------
def _tri_mul_proj_kernel(z_ref, m_ref, lng_ref, lnb_ref, wf_ref, bp_ref,
                         bpg_ref, bg_ref, pab_ref, gate_ref, *, c_hidden,
                         channel_major):
    z = z_ref[0]                                    # (TI, N, C)
    m = m_ref[0]                                    # (TI, N)
    ti, n, c = z.shape
    c2 = 2 * c_hidden
    zf = z.reshape(ti * n, c)
    xn = _layernorm(zf, lng_ref[...], lnb_ref[...]).astype(jnp.bfloat16)
    # Single fused [p | p_gate | out_gate] projection.
    fused = jnp.dot(xn, wf_ref[...], preferred_element_type=jnp.float32)
    p_lin = fused[:, :c2] + bp_ref[...]
    p_gate = jax.nn.sigmoid(fused[:, c2:2 * c2] + bpg_ref[...])
    g_out = jax.nn.sigmoid(fused[:, 2 * c2:] + bg_ref[...])    # (TI*N, C)
    p3 = (p_lin * p_gate).reshape(ti, n, c2) * m[:, :, None]
    if channel_major:
        # channel-major a||b straight to HBM: no extra XLA transpose pass.
        pab_ref[0] = jnp.transpose(p3, (2, 0, 1)).astype(jnp.bfloat16)
    else:
        pab_ref[0] = p3.astype(jnp.bfloat16)
    gate_ref[0] = g_out.reshape(ti, n, -1).astype(jnp.bfloat16)


def _tri_mul_contract_kernel(a_ref, b_ref, z_ref, g_ref, wo_ref, ob_ref,
                             out_ref, acc_ref, *, outgoing, channel_major_fin):
    k = pl.program_id(3)

    @pl.when(k == 0)
    def _():
        acc_ref[...] = jnp.zeros_like(acc_ref)

    a = a_ref[0]            # outgoing: (c, TI, TK) ; incoming: (c, TK, TI)
    b = b_ref[0]            # outgoing: (c, TJ, TK) ; incoming: (c, TK, TJ)
    if outgoing:
        # ab[i, j, c] += sum_k a[i, k, c] * b[j, k, c]
        acc_ref[...] += jax.lax.dot_general(
            a, b, (((2,), (2,)), ((0,), (0,))),
            preferred_element_type=jnp.float32)     # (c, TI, TJ)
    else:
        # ab[i, j, c] += sum_k a[k, i, c] * b[k, j, c]
        acc_ref[...] += jax.lax.dot_general(
            a, b, (((1,), (1,)), ((0,), (0,))),
            preferred_element_type=jnp.float32)     # (c, TI, TJ)

    @pl.when(k == pl.num_programs(3) - 1)
    def _():
        acc = acc_ref[...]                          # (c, TI, TJ), f32
        c_h, ti, tj = acc.shape
        zt = z_ref[0]                               # (TI, TJ, C) f32
        gt = g_ref[0].astype(jnp.float32)           # (TI, TJ, C) (bf16 in)
        cc = zt.shape[-1]
        if channel_major_fin:
            # Channel-major LayerNorm (VPU adds across slabs); the LN affine
            # is folded into wo/ob, so only normalize here.
            mu = jnp.mean(acc, axis=0, keepdims=True)
            var = jnp.mean(jnp.square(acc - mu), axis=0, keepdims=True)
            nrm = (acc - mu) * jax.lax.rsqrt(var + LN_EPS)
            abn = nrm.reshape(c_h, ti * tj).astype(jnp.bfloat16)
            o = jax.lax.dot_general(
                abn, wo_ref[...], (((0,), (0,)), ((), ())),
                preferred_element_type=jnp.float32)             # (TI*TJ, C)
        else:
            ab = jnp.stack([acc[d] for d in range(c_h)], axis=-1)
            abf = ab.reshape(ti * tj, c_h)
            mu = jnp.mean(abf, axis=-1, keepdims=True)
            var = jnp.mean(jnp.square(abf - mu), axis=-1, keepdims=True)
            abn = ((abf - mu) * jax.lax.rsqrt(var + LN_EPS)
                   ).astype(jnp.bfloat16)
            o = jnp.dot(abn, wo_ref[...], preferred_element_type=jnp.float32)
        o = o + ob_ref[...]
        out = zt.reshape(ti * tj, cc) + gt.reshape(ti * tj, cc) * o
        out_ref[0] = out.reshape(ti, tj, cc)


def tri_multiplication(z, mask, p, *, c_hidden, outgoing,
                       proj_row_tile=16, row_tile=128, col_tile=128,
                       k_tile=128):
    B, N, _, C = z.shape
    c2 = 2 * c_hidden
    channel_major = _fancy_layout_ok()
    ti_p = _pick_tile(N, proj_row_tile, 8)
    ti = _pick_tile(N, row_tile, 128)
    tj = _pick_tile(N, col_tile, 128)
    tk = _pick_tile(N, k_tile, 128)

    if channel_major:
        pab_shape = jax.ShapeDtypeStruct((B, c2, N, N), jnp.bfloat16)
        pab_spec = pl.BlockSpec((1, c2, ti_p, N), lambda b, i: (b, 0, i, 0))
    else:
        pab_shape = jax.ShapeDtypeStruct((B, N, N, c2), jnp.bfloat16)
        pab_spec = pl.BlockSpec((1, ti_p, N, c2), lambda b, i: (b, i, 0, 0))

    # Pass 1: row-tiled fused gated projections (a||b channel-major) + gate.
    proj_kern = functools.partial(_tri_mul_proj_kernel, c_hidden=c_hidden,
                                  channel_major=channel_major)
    pab, gate = pl.pallas_call(
        proj_kern,
        out_shape=(pab_shape,
                   jax.ShapeDtypeStruct((B, N, N, C), jnp.bfloat16)),
        grid=(B, N // ti_p),
        in_specs=[pl.BlockSpec((1, ti_p, N, C), lambda b, i: (b, i, 0, 0)),
                  pl.BlockSpec((1, ti_p, N), lambda b, i: (b, i, 0)),
                  _full_spec(p['ln1_g']), _full_spec(p['ln1_b']),
                  _full_spec(p['w_f']), _full_spec(p['b_p']),
                  _full_spec(p['b_pg']), _full_spec(p['b_g'])],
        out_specs=(pab_spec,
                   pl.BlockSpec((1, ti_p, N, C), lambda b, i: (b, i, 0, 0))),
        compiler_params=_cparams(("parallel", "parallel")),
    )(z, mask, p['ln1_g'], p['ln1_b'], p['w_f'], p['b_p'], p['b_pg'],
      p['b_g'])

    if not channel_major:
        # TODO(synk): fallback keeps one XLA transpose pass when in-kernel
        # minor-dim transposes are unavailable on this toolchain.
        pab = jnp.transpose(pab, (0, 3, 1, 2))      # (B, 2c, N, N), bf16

    # Pass 2: (i, j, k)-tiled channel-batched MXU contraction with a VMEM f32
    # accumulator and a fused channel-major LN + output-projection finalize.
    if outgoing:
        a_spec = pl.BlockSpec((1, c_hidden, ti, tk),
                              lambda b, i, j, k: (b, 0, i, k))
        b_spec = pl.BlockSpec((1, c_hidden, tj, tk),
                              lambda b, i, j, k: (b, 1, j, k))
    else:
        a_spec = pl.BlockSpec((1, c_hidden, tk, ti),
                              lambda b, i, j, k: (b, 0, k, i))
        b_spec = pl.BlockSpec((1, c_hidden, tk, tj),
                              lambda b, i, j, k: (b, 1, k, j))
    zg_spec = pl.BlockSpec((1, ti, tj, C), lambda b, i, j, k: (b, i, j, 0))

    kern = functools.partial(_tri_mul_contract_kernel, outgoing=outgoing,
                             channel_major_fin=channel_major)
    return pl.pallas_call(
        kern,
        out_shape=jax.ShapeDtypeStruct((B, N, N, C), jnp.float32),
        grid=(B, N // ti, N // tj, N // tk),
        in_specs=[a_spec, b_spec, zg_spec, zg_spec,
                  _full_spec(p['w_o']), _full_spec(p['out_b'])],
        out_specs=zg_spec,
        scratch_shapes=[pltpu.VMEM((c_hidden, ti, tj), jnp.float32)],
        compiler_params=_cparams(
            ("parallel", "parallel", "parallel", "arbitrary")),
    )(pab, pab, z, gate, p['w_o'], p['out_b'])


# ----------------------------------------------------------------------------
# Pair transition
# ----------------------------------------------------------------------------
def _transition_kernel(z_ref, lng_ref, lnb_ref, w1_ref, b1_ref, w2_ref, b2_ref,
                       out_ref):
    z = z_ref[0]                                    # (TI, N, C)
    ti, n, c = z.shape
    zf = z.reshape(ti * n, c)
    xn = _layernorm(zf, lng_ref[...], lnb_ref[...]).astype(jnp.bfloat16)
    h = jnp.maximum(
        jnp.dot(xn, w1_ref[...], preferred_element_type=jnp.float32)
        + b1_ref[...], 0.0)
    o = jnp.dot(h.astype(jnp.bfloat16), w2_ref[...],
                preferred_element_type=jnp.float32) + b2_ref[...]
    out_ref[0] = (zf + o).reshape(ti, n, c)


def pair_transition(z, p, *, row_tile=32):
    B, N, _, C = z.shape
    ti = _pick_tile(N, row_tile, 8)
    return pl.pallas_call(
        _transition_kernel,
        out_shape=jax.ShapeDtypeStruct((B, N, N, C), jnp.float32),
        grid=(B, N // ti),
        in_specs=[pl.BlockSpec((1, ti, N, C), lambda b, i: (b, i, 0, 0)),
                  _full_spec(p['ln_g']), _full_spec(p['ln_b']),
                  _full_spec(p['w_1']), _full_spec(p['b_1']),
                  _full_spec(p['w_2']), _full_spec(p['b_2'])],
        out_specs=pl.BlockSpec((1, ti, N, C), lambda b, i: (b, i, 0, 0)),
        compiler_params=_cparams(("parallel", "parallel")),
    )(z, p['ln_g'], p['ln_b'], p['w_1'], p['b_1'], p['w_2'], p['b_2'])


# ----------------------------------------------------------------------------
# Full block (glue in plain JAX: padding / stripping only; no z transposes)
# ----------------------------------------------------------------------------
def template_pair_block(z, mask, params, *, n_head, c_att, c_mul,
                        first_block=True, last_block=True):
    seq = mask.shape[-1]
    # Residue axes padded to a sublane-aligned size (covers the reference's
    # dap '+1' padding): padded rows/cols carry mask=0, so the real region is
    # unchanged and every BlockSpec stays 8/128-friendly.
    n_pad = _round_up(seq, 8)
    pad = n_pad - seq
    if pad:
        if first_block:
            z = jnp.pad(z, ((0, 0), (0, pad), (0, pad), (0, 0)))
        mask = jnp.pad(mask, ((0, 0), (0, pad), (0, pad)))
    mask_t = jnp.swapaxes(mask, 1, 2)       # tiny; z itself is never moved
    fancy = _fancy_layout_ok()

    # TriangleAttentionStartingNode
    z = tri_attention(z, mask, params['att_start'], n_head=n_head,
                      c_hidden=c_att)

    # TriangleAttentionEndingNode
    if fancy:
        z = tri_attention(z, mask_t, params['att_end'], n_head=n_head,
                          c_hidden=c_att, transposed=True)
    else:
        # TODO(synk): fallback keeps the HBM transposes when in-kernel tile
        # transposes are unavailable on this toolchain.
        zt = jnp.swapaxes(z, 1, 2)
        zt = tri_attention(zt, mask_t, params['att_end'], n_head=n_head,
                           c_hidden=c_att)
        z = jnp.swapaxes(zt, 1, 2)

    # TriangleMultiplicationOutgoing / Incoming
    z = tri_multiplication(z, mask, params['mul_out'], c_hidden=c_mul,
                           outgoing=True)
    z = tri_multiplication(z, mask, params['mul_in'], c_hidden=c_mul,
                           outgoing=False)

    # PairTransition
    z = pair_transition(z, params['transition'])

    if last_block and pad:
        z = z[:, :seq, :seq, :]
    return z


# ----------------------------------------------------------------------------
# Parameters: raw (module-layout) init + one-time kernel-layout preparation
# ----------------------------------------------------------------------------
def init_params(key, c_t, c_att, n_head, c_mul, trans_n):
    keys = iter(jax.random.split(key, 64))

    def w(shape, scale=0.1):
        return jax.random.normal(next(keys), shape, jnp.float32) * scale

    def attn_params():
        hc = n_head * c_att
        return dict(
            ln_g=jnp.ones((1, c_t), jnp.float32),
            ln_b=jnp.zeros((1, c_t), jnp.float32),
            w_b=w((c_t, n_head)),
            w_q=w((c_t, hc)), w_k=w((c_t, hc)), w_v=w((c_t, hc)),
            w_g=w((c_t, hc)),
            b_g=jnp.ones((1, hc), jnp.float32),      # gating bias init = 1
            w_o=w((hc, c_t)),
            out_b=jnp.zeros((1, c_t), jnp.float32),  # fused output bias
        )

    def mul_params():
        return dict(
            ln1_g=jnp.ones((1, c_t), jnp.float32),
            ln1_b=jnp.zeros((1, c_t), jnp.float32),
            w_p=w((c_t, 2 * c_mul)),
            b_p=w((1, 2 * c_mul), 0.01),
            w_pg=w((c_t, 2 * c_mul)),
            b_pg=jnp.ones((1, 2 * c_mul), jnp.float32),
            w_g=w((c_t, c_t)),
            b_g=jnp.ones((1, c_t), jnp.float32),
            ln2_g=jnp.ones((1, c_mul), jnp.float32),
            ln2_b=jnp.zeros((1, c_mul), jnp.float32),
            w_o=w((c_mul, c_t)),
            out_b=jnp.zeros((1, c_t), jnp.float32),
        )

    trans = dict(
        ln_g=jnp.ones((1, c_t), jnp.float32),
        ln_b=jnp.zeros((1, c_t), jnp.float32),
        w_1=w((c_t, trans_n * c_t)),
        b_1=w((1, trans_n * c_t), 0.01),
        w_2=w((trans_n * c_t, c_t)),
        b_2=w((1, c_t), 0.01),
    )
    return dict(att_start=attn_params(), att_end=attn_params(),
                mul_out=mul_params(), mul_in=mul_params(), transition=trans)


def prepare_params(raw):
    """One-time weight fusion / bf16 casting / LN-affine folding, kept out of
    the per-block call path."""
    def attn(a):
        return dict(
            ln_g=a['ln_g'], ln_b=a['ln_b'],
            w_b=a['w_b'].astype(jnp.bfloat16),
            w_qkvg=jnp.concatenate([a['w_q'], a['w_k'], a['w_v'], a['w_g']],
                                   axis=1).astype(jnp.bfloat16),
            b_g=a['b_g'],
            w_o=a['w_o'].astype(jnp.bfloat16),
            out_b=a['out_b'])

    def mul(m):
        # Fold layer_norm_out's affine into the output projection:
        #   ((x_hat * g) + b) @ W = x_hat @ (g[:, None] * W) + b @ W
        w_o = m['ln2_g'].reshape(-1, 1) * m['w_o']
        out_b = m['out_b'] + m['ln2_b'].reshape(1, -1) @ m['w_o']
        return dict(
            ln1_g=m['ln1_g'], ln1_b=m['ln1_b'],
            w_f=jnp.concatenate([m['w_p'], m['w_pg'], m['w_g']],
                                axis=1).astype(jnp.bfloat16),
            b_p=m['b_p'], b_pg=m['b_pg'], b_g=m['b_g'],
            w_o=w_o.astype(jnp.bfloat16), out_b=out_b)

    def trans(t):
        return dict(ln_g=t['ln_g'], ln_b=t['ln_b'],
                    w_1=t['w_1'].astype(jnp.bfloat16), b_1=t['b_1'],
                    w_2=t['w_2'].astype(jnp.bfloat16), b_2=t['b_2'])

    return dict(att_start=attn(raw['att_start']), att_end=attn(raw['att_end']),
                mul_out=mul(raw['mul_out']), mul_in=mul(raw['mul_in']),
                transition=trans(raw['transition']))


if __name__ == "__main__":
    # Small shapes: 2 templates, seq 12 (padded to 16), c_t 16, 4 heads,
    # attention hidden 8, multiplication hidden 16, transition_n 2.
    B, S = 2, 12
    C_T, N_HEAD, C_ATT, C_MUL, TRANS_N = 16, 4, 8, 16, 2

    key = jax.random.PRNGKey(0)
    k_z, k_m, k_p = jax.random.split(key, 3)

    z = jax.random.normal(k_z, (B, S, S, C_T), jnp.float32)
    res_mask = (jax.random.uniform(k_m, (B, S)) > 0.15).astype(jnp.float32)
    mask = res_mask[:, :, None] * res_mask[:, None, :]       # [B, S, S]

    params = prepare_params(init_params(k_p, C_T, C_ATT, N_HEAD, C_MUL,
                                        TRANS_N))

    out = template_pair_block(z, mask, params, n_head=N_HEAD, c_att=C_ATT,
                              c_mul=C_MUL, first_block=True, last_block=True)
    out = jax.block_until_ready(out)

    assert out.shape == (B, S, S, C_T), out.shape
    assert bool(jnp.isfinite(out).all())
    print("KERNEL_OK")
</pallas_src>

<mosaic_0001>
module attributes {stable_mosaic.version = 11 : i64} {
  func.func @_probe_kernel(%arg0: memref<4x16x8xf32, #tpu.memory_space<vmem>>, %arg1: memref<8x16xf32, #tpu.memory_space<vmem>>, %arg2: memref<16x4x8xf32, #tpu.memory_space<vmem>>, %arg3: memref<64x16xf32, #tpu.memory_space<vmem>>) attributes {dimension_semantics = [], scalar_prefetch = 0 : i64, scratch_operands = 0 : i64, tpu.core_type = #tpu.core_type<tc>} {
    %c0 = arith.constant 0 : index
    %c0_0 = arith.constant 0 : index
    %c0_1 = arith.constant 0 : index
    %0 = vector.load %arg0[%c0, %c0_0, %c0_1] : memref<4x16x8xf32, #tpu.memory_space<vmem>>, vector<4x16x8xf32>
    %1 = tpu.transpose %0, [1, 0, 2] : vector<4x16x8xf32> -> vector<16x4x8xf32>
    %c0_2 = arith.constant 0 : index
    %c0_3 = arith.constant 0 : index
    %c0_4 = arith.constant 0 : index
    %2 = vector.load %arg2[%c0_2, %c0_3, %c0_4] : memref<16x4x8xf32, #tpu.memory_space<vmem>>, vector<16x4x8xf32>
    tpu.vector_store %arg2[%c0_2, %c0_3, %c0_4], %1 {strides = array<i32>} : memref<16x4x8xf32, #tpu.memory_space<vmem>>, vector<16x4x8xf32>,
    %3 = tpu.transpose %0, [2, 0, 1] : vector<4x16x8xf32> -> vector<8x4x16xf32>
    %4 = vector.shape_cast %3 : vector<8x4x16xf32> to vector<8x64xf32>
    %c0_5 = arith.constant 0 : index
    %c0_6 = arith.constant 0 : index
    %5 = vector.load %arg1[%c0_5, %c0_6] : memref<8x16xf32, #tpu.memory_space<vmem>>, vector<8x16xf32>
    %cst = arith.constant dense<0.000000e+00> : vector<64x16xf32>
    %6 = tpu.matmul %4, %5, %cst {dimension_numbers = #tpu.dot_dimension_numbers<[0], [0], [1], [1], [0, 1, 1, 1], [], []>} : vector<8x64xf32>, vector<8x16xf32>, vector<64x16xf32> -> vector<64x16xf32>
    %c0_7 = arith.constant 0 : index
    %c0_8 = arith.constant 0 : index
    %7 = vector.load %arg3[%c0_7, %c0_8] : memref<64x16xf32, #tpu.memory_space<vmem>>, vector<64x16xf32>
    tpu.vector_store %arg3[%c0_7, %c0_8], %6 {strides = array<i32>} : memref<64x16xf32, #tpu.memory_space<vmem>>, vector<64x16xf32>,
    return
  }
}

module attributes {stable_mosaic.version = 11 : i64} {
  func.func @_tri_bias_kernel(%arg0: i32, %arg1: i32, %arg2: memref<1x8x16x16xf32, #tpu.memory_space<vmem>>, %arg3: memref<1x16xf32, #tpu.memory_space<vmem>>, %arg4: memref<1x16xf32, #tpu.memory_space<vmem>>, %arg5: memref<16x4xbf16, #tpu.memory_space<vmem>>, %arg6: memref<1x4x8x16xbf16, #tpu.memory_space<vmem>>) attributes {dimension_semantics = [#tpu.dimension_semantics<parallel>, #tpu.dimension_semantics<parallel>], iteration_bounds = array<i64: 2, 2>, scalar_prefetch = 0 : i64, scratch_operands = 0 : i64, tpu.core_type = #tpu.core_type<tc>, window_params = [{transform_indices = @transform_0, window_bounds = array<i64: 1, 8, 16, 16>}, {pipeline_mode = #tpu.pipeline_mode<synchronous>, transform_indices = @transform_1, window_bounds = array<i64: 1, 16>}, {pipeline_mode = #tpu.pipeline_mode<synchronous>, transform_indices = @transform_2, window_bounds = array<i64: 1, 16>}, {pipeline_mode = #tpu.pipeline_mode<synchronous>, transform_indices = @transform_3, window_bounds = array<i64: 16, 4>}, {transform_indices = @transform_4, window_bounds = array<i64: 1, 4, 8, 16>}]} {
    %c0 = arith.constant 0 : index
    %c0_0 = arith.constant 0 : index
    %c0_1 = arith.constant 0 : index
    %c0_2 = arith.constant 0 : index
    %0 = vector.load %arg2[%c0, %c0_0, %c0_1, %c0_2] : memref<1x8x16x16xf32, #tpu.memory_space<vmem>>, vector<1x8x16x16xf32>
    %1 = vector.shape_cast %0 : vector<1x8x16x16xf32> to vector<8x16x16xf32>
    %2 = vector.shape_cast %1 : vector<8x16x16xf32> to vector<128x16xf32>
    %c0_3 = arith.constant 0 : index
    %c0_4 = arith.constant 0 : index
    %3 = vector.load %arg3[%c0_3, %c0_4] : memref<1x16xf32, #tpu.memory_space<vmem>>, vector<1x16xf32>
    %c0_5 = arith.constant 0 : index
    %c0_6 = arith.constant 0 : index
    %4 = vector.load %arg4[%c0_5, %c0_6] : memref<1x16xf32, #tpu.memory_space<vmem>>, vector<1x16xf32>
    %cst = arith.constant dense<0.000000e+00> : vector<128xf32>
    %5 = vector.multi_reduction <add>, %2, %cst [1] : vector<128x16xf32> to vector<128xf32>
    %6 = vector.shape_cast %5 : vector<128xf32> to vector<128x1xf32>
    %cst_7 = arith.constant 1.600000e+01 : f32
    %7 = vector.broadcast %cst_7 : f32 to vector<128x1xf32>
    %8 = arith.divf %6, %7 : vector<128x1xf32>
    %9 = vector.broadcast %8 : vector<128x1xf32> to vector<128x16xf32>
    %10 = arith.subf %2, %9 : vector<128x16xf32>
    %11 = arith.mulf %10, %10 : vector<128x16xf32>
    %cst_8 = arith.constant dense<0.000000e+00> : vector<128xf32>
    %12 = vector.multi_reduction <add>, %11, %cst_8 [1] : vector<128x16xf32> to vector<128xf32>
    %13 = vector.shape_cast %12 : vector<128xf32> to vector<128x1xf32>
    %cst_9 = arith.constant 1.600000e+01 : f32
    %14 = vector.broadcast %cst_9 : f32 to vector<128x1xf32>
    %15 = arith.divf %13, %14 : vector<128x1xf32>
    %16 = vector.broadcast %8 : vector<128x1xf32> to vector<128x16xf32>
    %17 = arith.subf %2, %16 : vector<128x16xf32>
    %cst_10 = arith.constant 9.99999974E-6 : f32
    %18 = vector.broadcast %cst_10 : f32 to vector<128x1xf32>
    %19 = arith.addf %15, %18 : vector<128x1xf32>
    %20 = math.rsqrt %19 : vector<128x1xf32>
    %21 = vector.broadcast %20 : vector<128x1xf32> to vector<128x16xf32>
    %22 = arith.mulf %17, %21 : vector<128x16xf32>
    %23 = vector.broadcast %3 : vector<1x16xf32> to vector<128x16xf32>
    %24 = arith.mulf %22, %23 : vector<128x16xf32>
    %25 = vector.broadcast %4 : vector<1x16xf32> to vector<128x16xf32>
    %26 = arith.addf %24, %25 : vector<128x16xf32>
    %27 = arith.truncf %26 : vector<128x16xf32> to vector<128x16xbf16>
    %c0_11 = arith.constant 0 : index
    %c0_12 = arith.constant 0 : index
    %28 = vector.load %arg5[%c0_11, %c0_12] : memref<16x4xbf16, #tpu.memory_space<vmem>>, vector<16x4xbf16>
    %cst_13 = arith.constant dense<0.000000e+00> : vector<128x4xf32>
    %29 = tpu.matmul %27, %28, %cst_13 {dimension_numbers = #tpu.dot_dimension_numbers<[1], [0], [0], [1], [0, 0, 1, 1], [], []>} : vector<128x16xbf16>, vector<16x4xbf16>, vector<128x4xf32> -> vector<128x4xf32>
    %30 = vector.shape_cast %29 : vector<128x4xf32> to vector<8x16x4xf32>
    %31 = vector.extract_strided_slice %30 {offsets = [0, 0, 0], sizes = [8, 16, 1], strides = [1, 1, 1]} : vector<8x16x4xf32> to vector<8x16x1xf32>
    %32 = vector.shape_cast %31 : vector<8x16x1xf32> to vector<8x16xf32>
    %33 = arith.truncf %32 : vector<8x16xf32> to vector<8x16xbf16>
    %c0_14 = arith.constant 0 : index
    %c0_15 = arith.constant 0 : index
    %c0_16 = arith.constant 0 : index
    %c0_17 = arith.constant 0 : index
    %34 = vector.load %arg6[%c0_14, %c0_15, %c0_16, %c0_17] : memref<1x4x8x16xbf16, #tpu.memory_space<vmem>>, vector<1x1x8x16xbf16>
    %35 = vector.shape_cast %34 : vector<1x1x8x16xbf16> to vector<8x16xbf16>
    %36 = vector.shape_cast %33 : vector<8x16xbf16> to vector<1x1x8x16xbf16>
    tpu.vector_store %arg6[%c0_14, %c0_15, %c0_16, %c0_17], %36 {strides = array<i32>} : memref<1x4x8x16xbf16, #tpu.memory_space<vmem>>, vector<1x1x8x16xbf16>,
    %37 = vector.extract_strided_slice %30 {offsets = [0, 0, 1], sizes = [8, 16, 1], strides = [1, 1, 1]} : vector<8x16x4xf32> to vector<8x16x1xf32>
    %38 = vector.shape_cast %37 : vector<8x16x1xf32> to vector<8x16xf32>
    %39 = arith.truncf %38 : vector<8x16xf32> to vector<8x16xbf16>
    %c0_18 = arith.constant 0 : index
    %c1 = arith.constant 1 : index
    %c0_19 = arith.constant 0 : index
    %c0_20 = arith.constant 0 : index
    %40 = vector.load %arg6[%c0_18, %c1, %c0_19, %c0_20] : memref<1x4x8x16xbf16, #tpu.memory_space<vmem>>, vector<1x1x8x16xbf16>
    %41 = vector.shape_cast %40 : vector<1x1x8x16xbf16> to vector<8x16xbf16>
    %42 = vector.shape_cast %39 : vector<8x16xbf16> to vector<1x1x8x16xbf16>
    tpu.vector_store %arg6[%c0_18, %c1, %c0_19, %c0_20], %42 {strides = array<i32>} : memref<1x4x8x16xbf16, #tpu.memory_space<vmem>>, vector<1x1x8x16xbf16>,
    %43 = vector.extract_strided_slice %30 {offsets = [0, 0, 2], sizes = [8, 16, 1], strides = [1, 1, 1]} : vector<8x16x4xf32> to vector<8x16x1xf32>
    %44 = vector.shape_cast %43 : vector<8x16x1xf32> to vector<8x16xf32>
    %45 = arith.truncf %44 : vector<8x16xf32> to vector<8x16xbf16>
    %c0_21 = arith.constant 0 : index
    %c2 = arith.constant 2 : index
    %c0_22 = arith.constant 0 : index
    %c0_23 = arith.constant 0 : index
    %46 = vector.load %arg6[%c0_21, %c2, %c0_22, %c0_23] : memref<1x4x8x16xbf16, #tpu.memory_space<vmem>>, vector<1x1x8x16xbf16>
    %47 = vector.shape_cast %46 : vector<1x1x8x16xbf16> to vector<8x16xbf16>
    %48 = vector.shape_cast %45 : vector<8x16xbf16> to vector<1x1x8x16xbf16>
    tpu.vector_store %arg6[%c0_21, %c2, %c0_22, %c0_23], %48 {strides = array<i32>} : memref<1x4x8x16xbf16, #tpu.memory_space<vmem>>, vector<1x1x8x16xbf16>,
    %49 = vector.extract_strided_slice %30 {offsets = [0, 0, 3], sizes = [8, 16, 1], strides = [1, 1, 1]} : vector<8x16x4xf32> to vector<8x16x1xf32>
    %50 = vector.shape_cast %49 : vector<8x16x1xf32> to vector<8x16xf32>
    %51 = arith.truncf %50 : vector<8x16xf32> to vector<8x16xbf16>
    %c0_24 = arith.constant 0 : index
    %c3 = arith.constant 3 : index
    %c0_25 = arith.constant 0 : index
    %c0_26 = arith.constant 0 : index
    %52 = vector.load %arg6[%c0_24, %c3, %c0_25, %c0_26] : memref<1x4x8x16xbf16, #tpu.memory_space<vmem>>, vector<1x1x8x16xbf16>
    %53 = vector.shape_cast %52 : vector<1x1x8x16xbf16> to vector<8x16xbf16>
    %54 = vector.shape_cast %51 : vector<8x16xbf16> to vector<1x1x8x16xbf16>
    tpu.vector_store %arg6[%c0_24, %c3, %c0_25, %c0_26], %54 {strides = array<i32>} : memref<1x4x8x16xbf16, #tpu.memory_space<vmem>>, vector<1x1x8x16xbf16>,
    return
  }
  func.func @transform_0(%arg0: i32, %arg1: i32) -> (i32, i32, i32, i32) {
    %c0_i32 = arith.constant 0 : i32
    %c0_i32_0 = arith.constant 0 : i32
    %c0_i32_1 = arith.constant 0 : i32
    return %arg0, %arg1, %c0_i32, %c0_i32_0 : i32, i32, i32, i32
  }
  func.func @transform_1(%arg0: i32, %arg1: i32) -> (i32, i32) {
    %c0_i32 = arith.constant 0 : i32
    %c0_i32_0 = arith.constant 0 : i32
    %c0_i32_1 = arith.constant 0 : i32
    return %c0_i32, %c0_i32_0 : i32, i32
  }
  func.func @transform_2(%arg0: i32, %arg1: i32) -> (i32, i32) {
    %c0_i32 = arith.constant 0 : i32
    %c0_i32_0 = arith.constant 0 : i32
    %c0_i32_1 = arith.constant 0 : i32
    return %c0_i32, %c0_i32_0 : i32, i32
  }
  func.func @transform_3(%arg0: i32, %arg1: i32) -> (i32, i32) {
    %c0_i32 = arith.constant 0 : i32
    %c0_i32_0 = arith.constant 0 : i32
    %c0_i32_1 = arith.constant 0 : i32
    return %c0_i32, %c0_i32_0 : i32, i32
  }
  func.func @transform_4(%arg0: i32, %arg1: i32) -> (i32, i32, i32, i32) {
    %c0_i32 = arith.constant 0 : i32
    %c0_i32_0 = arith.constant 0 : i32
    %c0_i32_1 = arith.constant 0 : i32
    return %arg0, %c0_i32, %arg1, %c0_i32_0 : i32, i32, i32, i32
  }
}

</mosaic_0001>

<llo_original>
// kernel: tpu_custom_call.1
$region0: #{tpu_custom_call.1}
  #allocation0 [shape = 'u32[]', space=smem, size = 0x4, offset = 0x4, fixed_abs, tag = 'smem constant byte address 0x4 - core index']
  #allocation1 [shape = 'u32[72,128]{1,0:T(1,128)}', space=vmem, size = 0x9000, scoped, tag = 'internal scratch']
  %s0 = inlined_call_operand.vmem [shape: f32[4,16,8], index: 0, kind: input, shape index: {}]
  %s1 = inlined_call_operand.vmem [shape: f32[8,16], index: 1, kind: input, shape index: {}]
  %s2 = inlined_call_operand.vmem [shape: f32[16,4,8], index: 2, kind: output, shape index: {0}]
  %s3 = inlined_call_operand.vmem [shape: f32[64,16], index: 3, kind: output, shape index: {1}]
  %4 = xla_tuple %s2, %s3
  %s5 = sld [smem:[#allocation0]]
  $region26: #{tpu_custom_call.1} parent=0
    _
  %s7 = ssub.s32 1, %s5
  %s8 = scalar_select 0, %s7, %s5
  // Predicated region
  $region2: #{tpu_custom_call.1} parent=0 // pred_check
    _
  $region3: #{tpu_custom_call.1} parent=0 // pred_check_branch
    %10 = sbr.rel (0) target = $region5
  $region4: #{tpu_custom_call.1} parent=0 // pred_region
    _
  $region5: #{tpu_custom_call.1} parent=0 // pred_fallthru
    _
  // Predicated region
  $region6: #{tpu_custom_call.1} parent=0 // pred_check
    _
  $region7: #{tpu_custom_call.1} parent=0 // pred_check_branch
    %12 = sbr.rel (0) target = $region9
  $region8: #{tpu_custom_call.1} parent=0 // pred_region
    _
  $region9: #{tpu_custom_call.1} parent=0 // pred_fallthru
    _
  %v13 = vld [vmem:[%s0] sm:$0xff]
  %v14 = vld [vmem:[%s0 + $0x8] sm:$0xff]
  %v15 = vld [vmem:[%s0 + $0x10] sm:$0xff]
  %v16 = vld [vmem:[%s0 + $0x18] sm:$0xff]
  %v17 = vld [vmem:[%s0 + $0x20] sm:$0xff]
  %v18 = vld [vmem:[%s0 + $0x28] sm:$0xff]
  %v19 = vld [vmem:[%s0 + $0x30] sm:$0xff]
  %v20 = vld [vmem:[%s0 + $0x38] sm:$0xff]
  %v21 = vrot.slane %v17, 4
  %vm22 = vcmask 1047556
  %v23 = vsel %vm22, %v21, %v13
  %v24 = vrot.slane %v13, 4
  %v25 = vsel %vm22, %v17, %v24
  %v27 = vunpack.c.l.s4 1983009808
  %v28 = vunpack.c.0.s8 %v27
  %v29 = vperm.slane %v23, %v28
  %v31 = vunpack.c.l.s4 1983009808
  %v32 = vunpack.c.0.s8 %v31
  %v33 = vperm.slane %v25, %v32
  %v34 = vrot.slane %v19, 4
  %v35 = vsel %vm22, %v34, %v15
  %v36 = vrot.slane %v15, 4
  %v37 = vsel %vm22, %v19, %v36
  %v39 = vunpack.c.l.s4 1983009808
  %v40 = vunpack.c.0.s8 %v39
  %v41 = vperm.slane %v35, %v40
  %v43 = vunpack.c.l.s4 1983009808
  %v44 = vunpack.c.0.s8 %v43
  %v45 = vperm.slane %v37, %v44
  %v46 = vrot.slane %v41, 4
  %v47 = vsel %vm22, %v46, %v29
  %v48 = vrot.slane %v29, 4
  %v49 = vsel %vm22, %v41, %v48
  %v51 = vunpack.c.l.s4 1934713408
  %v52 = vunpack.c.0.s8 %v51
  %v53 = vperm.slane %v47, %v52
  %v55 = vunpack.c.l.s4 1934713408
  %v56 = vunpack.c.0.s8 %v55
  %v57 = vperm.slane %v49, %v56
  %v58 = vrot.slane %v45, 4
  %v59 = vsel %vm22, %v58, %v33
  %v60 = vrot.slane %v33, 4
  %v61 = vsel %vm22, %v45, %v60
  %v63 = vunpack.c.l.s4 1934713408
  %v64 = vunpack.c.0.s8 %v63
  %v65 = vperm.slane %v59, %v64
  %v67 = vunpack.c.l.s4 1934713408
  %v68 = vunpack.c.0.s8 %v67
  %v69 = vperm.slane %v61, %v68
  %v70 = vrot.slane %v53, 4
  %v71 = vsel %vm22, 0.0, %v70
  %v72 = vrot.slane %v57, 4
  %v73 = vsel %vm22, 0.0, %v72
  %v74 = vrot.slane %v65, 4
  %v75 = vsel %vm22, 0.0, %v74
  %v76 = vrot.slane %v69, 4
  %v77 = vsel %vm22, 0.0, %v76
  %v78 = vrot.slane %v18, 4
  %v79 = vsel %vm22, %v78, %v14
  %v80 = vrot.slane %v14, 4
  %v81 = vsel %vm22, %v18, %v80
  %v83 = vunpack.c.l.s4 1983009808
  %v84 = vunpack.c.0.s8 %v83
  %v85 = vperm.slane %v79, %v84
  %v87 = vunpack.c.l.s4 1983009808
  %v88 = vunpack.c.0.s8 %v87
  %v89 = vperm.slane %v81, %v88
  %v90 = vrot.slane %v20, 4
  %v91 = vsel %vm22, %v90, %v16
  %v92 = vrot.slane %v16, 4
  %v93 = vsel %vm22, %v20, %v92
  %v95 = vunpack.c.l.s4 1983009808
  %v96 = vunpack.c.0.s8 %v95
  %v97 = vperm.slane %v91, %v96
  %v99 = vunpack.c.l.s4 1983009808
  %v100 = vunpack.c.0.s8 %v99
  %v101 = vperm.slane %v93, %v100
  %v102 = vrot.slane %v97, 4
  %v103 = vsel %vm22, %v102, %v85
  %v104 = vrot.slane %v85, 4
  %v105 = vsel %vm22, %v97, %v104
  %v107 = vunpack.c.l.s4 1934713408
  %v108 = vunpack.c.0.s8 %v107
  %v109 = vperm.slane %v103, %v108
  %v111 = vunpack.c.l.s4 1934713408
  %v112 = vunpack.c.0.s8 %v111
  %v113 = vperm.slane %v105, %v112
  %v114 = vrot.slane %v101, 4
  %v115 = vsel %vm22, %v114, %v89
  %v116 = vrot.slane %v89, 4
  %v117 = vsel %vm22, %v101, %v116
  %v119 = vunpack.c.l.s4 1934713408
  %v120 = vunpack.c.0.s8 %v119
  %v121 = vperm.slane %v115, %v120
  %v123 = vunpack.c.l.s4 1934713408
  %v124 = vunpack.c.0.s8 %v123
  %v125 = vperm.slane %v117, %v124
  %v126 = vrot.slane %v109, 4
  %v127 = vsel %vm22, 0.0, %v126
  %v128 = vrot.slane %v113, 4
  %v129 = vsel %vm22, 0.0, %v128
  %v130 = vrot.slane %v121, 4
  %v131 = vsel %vm22, 0.0, %v130
  %v132 = vrot.slane %v125, 4
  %v133 = vsel %vm22, 0.0, %v132
  %vm134 = vcmask 60416
  %135 = vst.msk [vmem:[%s2] sm:$0xf] %vm134, %v53
  %136 = vst.msk [vmem:[%s2 + $0x4] sm:$0xf] %vm134, %v71
  %137 = vst.msk [vmem:[%s2 + $0x8] sm:$0xf] %vm134, %v57
  %138 = vst.msk [vmem:[%s2 + $0xc] sm:$0xf] %vm134, %v73
  %139 = vst.msk [vmem:[%s2 + $0x10] sm:$0xf] %vm134, %v65
  %140 = vst.msk [vmem:[%s2 + $0x14] sm:$0xf] %vm134, %v75
  %141 = vst.msk [vmem:[%s2 + $0x18] sm:$0xf] %vm134, %v69
  %142 = vst.msk [vmem:[%s2 + $0x1c] sm:$0xf] %vm134, %v77
  %143 = vst.msk [vmem:[%s2 + $0x20] sm:$0xf] %vm134, %v109
  %144 = vst.msk [vmem:[%s2 + $0x24] sm:$0xf] %vm134, %v127
  %145 = vst.msk [vmem:[%s2 + $0x28] sm:$0xf] %vm134, %v113
  %146 = vst.msk [vmem:[%s2 + $0x2c] sm:$0xf] %vm134, %v129
  %147 = vst.msk [vmem:[%s2 + $0x30] sm:$0xf] %vm134, %v121
  %148 = vst.msk [vmem:[%s2 + $0x34] sm:$0xf] %vm134, %v131
  %149 = vst.msk [vmem:[%s2 + $0x38] sm:$0xf] %vm134, %v125
  %150 = vst.msk [vmem:[%s2 + $0x3c] sm:$0xf] %vm134, %v133
  %151 = vxpose.xlu0.b32.start [1/16] %v13, 128
  %152 = vxpose.xlu0.b32.cont [2/16] %v14, 128
  %153 = vxpose.xlu0.b32.cont [3/16] 0.0, 128
  %154 = vxpose.xlu0.b32.cont [4/16] 0.0, 128
  %155 = vxpose.xlu0.b32.cont [5/16] 0.0, 128
  %156 = vxpose.xlu0.b32.cont [6/16] 0.0, 128
  %157 = vxpose.xlu0.b32.cont [7/16] 0.0, 128
  %158 = vxpose.xlu0.b32.cont [8/16] 0.0, 128
  %159 = vxpose.xlu0.b32.cont [9/16] 0.0, 128
  %160 = vxpose.xlu0.b32.cont [10/16] 0.0, 128
  %161 = vxpose.xlu0.b32.cont [11/16] 0.0, 128
  %162 = vxpose.xlu0.b32.cont [12/16] 0.0, 128
  %163 = vxpose.xlu0.b32.cont [13/16] 0.0, 128
  %164 = vxpose.xlu0.b32.cont [14/16] 0.0, 128
  %165 = vxpose.xlu0.b32.cont [15/16] 0.0, 128
  %166 = vxpose.xlu0.b32.end [16/16] 0.0, 128
  %v167 = vpop.trf.xlu0
  %v168 = vpop.trf.xlu0
  %v169 = vpop.trf.xlu0
  %v170 = vpop.trf.xlu0
  %v171 = vpop.trf.xlu0
  %v172 = vpop.trf.xlu0
  %v173 = vpop.trf.xlu0
  %v174 = vpop.trf.xlu0
  %v175 = vpop.trf.xlu0
  %v176 = vpop.trf.xlu0
  %v177 = vpop.trf.xlu0
  %v178 = vpop.trf.xlu0
  %v179 = vpop.trf.xlu0
  %v180 = vpop.trf.xlu0
  %v181 = vpop.trf.xlu0
  %v182 = vpop.trf.xlu0
  %183 = vxpose.xlu0.b32.start [1/16] %v15, 128
  %184 = vxpose.xlu0.b32.cont [2/16] %v16, 128
  %185 = vxpose.xlu0.b32.cont [3/16] 0.0, 128
  %186 = vxpose.xlu0.b32.cont [4/16] 0.0, 128
  %187 = vxpose.xlu0.b32.cont [5/16] 0.0, 128
  %188 = vxpose.xlu0.b32.cont [6/16] 0.0, 128
  %189 = vxpose.xlu0.b32.cont [7/16] 0.0, 128
  %190 = vxpose.xlu0.b32.cont [8/16] 0.0, 128
  %191 = vxpose.xlu0.b32.cont [9/16] 0.0, 128
  %192 = vxpose.xlu0.b32.cont [10/16] 0.0, 128
  %193 = vxpose.xlu0.b32.cont [11/16] 0.0, 128
  %194 = vxpose.xlu0.b32.cont [12/16] 0.0, 128
  %195 = vxpose.xlu0.b32.cont [13/16] 0.0, 128
  %196 = vxpose.xlu0.b32.cont [14/16] 0.0, 128
  %197 = vxpose.xlu0.b32.cont [15/16] 0.0, 128
  %198 = vxpose.xlu0.b32.end [16/16] 0.0, 128
  %v199 = vpop.trf.xlu0
  %v200 = vpop.trf.xlu0
  %v201 = vpop.trf.xlu0
  %v202 = vpop.trf.xlu0
  %v203 = vpop.trf.xlu0
  %v204 = vpop.trf.xlu0
  %v205 = vpop.trf.xlu0
  %v206 = vpop.trf.xlu0
  %v207 = vpop.trf.xlu0
  %v208 = vpop.trf.xlu0
  %v209 = vpop.trf.xlu0
  %v210 = vpop.trf.xlu0
  %v211 = vpop.trf.xlu0
  %v212 = vpop.trf.xlu0
  %v213 = vpop.trf.xlu0
  %v214 = vpop.trf.xlu0
  %215 = vxpose.xlu0.b32.start [1/16] %v17, 128
  %216 = vxpose.xlu0.b32.cont [2/16] %v18, 128
  %217 = vxpose.xlu0.b32.cont [3/16] 0.0, 128
  %218 = vxpose.xlu0.b32.cont [4/16] 0.0, 128
  %219 = vxpose.xlu0.b32.cont [5/16] 0.0, 128
  %220 = vxpose.xlu0.b32.cont [6/16] 0.0, 128
  %221 = vxpose.xlu0.b32.cont [7/16] 0.0, 128
  %222 = vxpose.xlu0.b32.cont [8/16] 0.0, 128
  %223 = vxpose.xlu0.b32.cont [9/16] 0.0, 128
  %224 = vxpose.xlu0.b32.cont [10/16] 0.0, 128
  %225 = vxpose.xlu0.b32.cont [11/16] 0.0, 128
  %226 = vxpose.xlu0.b32.cont [12/16] 0.0, 128
  %227 = vxpose.xlu0.b32.cont [13/16] 0.0, 128
  %228 = vxpose.xlu0.b32.cont [14/16] 0.0, 128
  %229 = vxpose.xlu0.b32.cont [15/16] 0.0, 128
  %230 = vxpose.xlu0.b32.end [16/16] 0.0, 128
  %v231 = vpop.trf.xlu0
  %v232 = vpop.trf.xlu0
  %v233 = vpop.trf.xlu0
  %v234 = vpop.trf.xlu0
  %v235 = vpop.trf.xlu0
  %v236 = vpop.trf.xlu0
  %v237 = vpop.trf.xlu0
  %v238 = vpop.trf.xlu0
  %v239 = vpop.trf.xlu0
  %v240 = vpop.trf.xlu0
  %v241 = vpop.trf.xlu0
  %v242 = vpop.trf.xlu0
  %v243 = vpop.trf.xlu0
  %v244 = vpop.trf.xlu0
  %v245 = vpop.trf.xlu0
  %v246 = vpop.trf.xlu0
  %247 = vxpose.xlu0.b32.start [1/16] %v19, 128
  %248 = vxpose.xlu0.b32.cont [2/16] %v20, 128
  %249 = vxpose.xlu0.b32.cont [3/16] 0.0, 128
  %250 = vxpose.xlu0.b32.cont [4/16] 0.0, 128
  %251 = vxpose.xlu0.b32.cont [5/16] 0.0, 128
  %252 = vxpose.xlu0.b32.cont [6/16] 0.0, 128
  %253 = vxpose.xlu0.b32.cont [7/16] 0.0, 128
  %254 = vxpose.xlu0.b32.cont [8/16] 0.0, 128
  %255 = vxpose.xlu0.b32.cont [9/16] 0.0, 128
  %256 = vxpose.xlu0.b32.cont [10/16] 0.0, 128
  %257 = vxpose.xlu0.b32.cont [11/16] 0.0, 128
  %258 = vxpose.xlu0.b32.cont [12/16] 0.0, 128
  %259 = vxpose.xlu0.b32.cont [13/16] 0.0, 128
  %260 = vxpose.xlu0.b32.cont [14/16] 0.0, 128
  %261 = vxpose.xlu0.b32.cont [15/16] 0.0, 128
  %262 = vxpose.xlu0.b32.end [16/16] 0.0, 128
  %v263 = vpop.trf.xlu0
  %v264 = vpop.trf.xlu0
  %v265 = vpop.trf.xlu0
  %v266 = vpop.trf.xlu0
  %v267 = vpop.trf.xlu0
  %v268 = vpop.trf.xlu0
  %v269 = vpop.trf.xlu0
  %v270 = vpop.trf.xlu0
  %v271 = vpop.trf.xlu0
  %v272 = vpop.trf.xlu0
  %v273 = vpop.trf.xlu0
  %v274 = vpop.trf.xlu0
  %v275 = vpop.trf.xlu0
  %v276 = vpop.trf.xlu0
  %v277 = vpop.trf.xlu0
  %v278 = vpop.trf.xlu0
  %v279 = vrot.slane %v231, 4
  %v280 = vsel %vm22, %v279, %v167
  %v281 = vrot.slane %v167, 4
  %v282 = vsel %vm22, %v231, %v281
  %v284 = vunpack.c.l.s4 1983009808
  %v285 = vunpack.c.0.s8 %v284
  %v286 = vperm.slane %v280, %v285
  %v288 = vunpack.c.l.s4 1983009808
  %v289 = vunpack.c.0.s8 %v288
  %v290 = vperm.slane %v282, %v289
  %v291 = vrot.slane %v263, 4
  %v292 = vsel %vm22, %v291, %v199
  %v293 = vrot.slane %v199, 4
  %v294 = vsel %vm22, %v263, %v293
  %v296 = vunpack.c.l.s4 1983009808
  %v297 = vunpack.c.0.s8 %v296
  %v298 = vperm.slane %v292, %v297
  %v300 = vunpack.c.l.s4 1983009808
  %v301 = vunpack.c.0.s8 %v300
  %v302 = vperm.slane %v294, %v301
  %v303 = vrot.slane %v298, 4
  %v304 = vsel %vm22, %v303, %v286
  %v305 = vrot.slane %v286, 4
  %v306 = vsel %vm22, %v298, %v305
  %v308 = vunpack.c.l.s4 1934713408
  %v309 = vunpack.c.0.s8 %v308
  %v310 = vperm.slane %v304, %v309
  %v312 = vunpack.c.l.s4 1934713408
  %v313 = vunpack.c.0.s8 %v312
  %v314 = vperm.slane %v306, %v313
  %v315 = vrot.slane %v302, 4
  %v316 = vsel %vm22, %v315, %v290
  %v317 = vrot.slane %v290, 4
  %v318 = vsel %vm22, %v302, %v317
  %v320 = vunpack.c.l.s4 1934713408
  %v321 = vunpack.c.0.s8 %v320
  %v322 = vperm.slane %v316, %v321
  %v324 = vunpack.c.l.s4 1934713408
  %v325 = vunpack.c.0.s8 %v324
  %v326 = vperm.slane %v318, %v325
  %v327 = vrot.slane %v310, 4
  %v328 = vsel %vm22, 0.0, %v327
  %v329 = vrot.slane %v314, 4
  %v330 = vsel %vm22, 0.0, %v329
  %v331 = vrot.slane %v322, 4
  %v332 = vsel %vm22, 0.0, %v331
  %v333 = vrot.slane %v326, 4
  %v334 = vsel %vm22, 0.0, %v333
  %v335 = vsel %vm22, %v329, %v310
  %v337 = vunpack.c.l.s4 1983009808
  %v338 = vunpack.c.0.s8 %v337
  %v339 = vperm.slane %v335, %v338
  %v340 = vrot.slane %v330, 4
  %v341 = vsel %vm22, %v340, %v328
  %v343 = vunpack.c.l.s4 1983009808
  %v344 = vunpack.c.0.s8 %v343
  %v345 = vperm.slane %v341, %v344
  %v346 = vsel %vm22, %v333, %v322
  %v348 = vunpack.c.l.s4 1983009808
  %v349 = vunpack.c.0.s8 %v348
  %v350 = vperm.slane %v346, %v349
  %v351 = vrot.slane %v334, 4
  %v352 = vsel %vm22, %v351, %v332
  %v354 = vunpack.c.l.s4 1983009808
  %v355 = vunpack.c.0.s8 %v354
  %v356 = vperm.slane %v352, %v355
  %v357 = vrot.slane %v345, 4
  %v358 = vsel %vm22, %v357, %v339
  %v359 = vrot.slane %v339, 4
  %v360 = vsel %vm22, %v345, %v359
  %v362 = vunpack.c.l.s4 1934713408
  %v363 = vunpack.c.0.s8 %v362
  %v364 = vperm.slane %v358, %v363
  %v366 = vunpack.c.l.s4 1934713408
  %v367 = vunpack.c.0.s8 %v366
  %v368 = vperm.slane %v360, %v367
  %v369 = vrot.slane %v356, 4
  %v370 = vsel %vm22, %v369, %v350
  %v371 = vrot.slane %v350, 4
  %v372 = vsel %vm22, %v356, %v371
  %v374 = vunpack.c.l.s4 1934713408
  %v375 = vunpack.c.0.s8 %v374
  %v376 = vperm.slane %v370, %v375
  %v378 = vunpack.c.l.s4 1934713408
  %v379 = vunpack.c.0.s8 %v378
  %v380 = vperm.slane %v372, %v379
  %v381 = vrot.slane %v376, 4
  %v382 = vsel %vm22, %v381, %v364
  %v383 = vrot.slane %v364, 4
  %v384 = vsel %vm22, %v376, %v383
  %v385 = vrot.slane %v380, 4
  %v386 = vsel %vm22, %v385, %v368
  %v387 = vrot.slane %v368, 4
  %v388 = vsel %vm22, %v380, %v387
  %390 = vrot.lane.b32.xlu0 %v384, 16
  %v391 = vpop.permute.xlu0 %390
  %394 = vrot.lane.b32.xlu0 %v386, 32
  %v395 = vpop.permute.xlu0 %394
  %398 = vrot.lane.b32.xlu0 %v388, 48
  %v399 = vpop.permute.xlu0 %398
  %vm401 = vcmask 130048
  %v402 = vsel %vm401, %v382, %v391
  %vm403 = vcmask 261120
  %v404 = vsel %vm403, %v402, %v395
  %vm405 = vcmask 392192
  %v406 = vsel %vm405, %v404, %v399
  %v407 = vld [vmem:[%s1] sm:$0xff]
  %408 = vxpose.xlu0.b32.start [1/16] %v406, 128
  %409 = vxpose.xlu0.b32.cont [2/16] 0.0, 128
  %410 = vxpose.xlu0.b32.cont [3/16] 0.0, 128
  %411 = vxpose.xlu0.b32.cont [4/16] 0.0, 128
  %412 = vxpose.xlu0.b32.cont [5/16] 0.0, 128
  %413 = vxpose.xlu0.b32.cont [6/16] 0.0, 128
  %414 = vxpose.xlu0.b32.cont [7/16] 0.0, 128
  %415 = vxpose.xlu0.b32.cont [8/16] 0.0, 128
  %416 = vxpose.xlu0.b32.cont [9/16] 0.0, 128
  %417 = vxpose.xlu0.b32.cont [10/16] 0.0, 128
  %418 = vxpose.xlu0.b32.cont [11/16] 0.0, 128
  %419 = vxpose.xlu0.b32.cont [12/16] 0.0, 128
  %420 = vxpose.xlu0.b32.cont [13/16] 0.0, 128
  %421 = vxpose.xlu0.b32.cont [14/16] 0.0, 128
  %422 = vxpose.xlu0.b32.cont [15/16] 0.0, 128
  %423 = vxpose.xlu0.b32.end [16/16] 0.0, 128
  %v424 = vpop.trf.xlu0
  %v425 = vpop.trf.xlu0
  %v426 = vpop.trf.xlu0
  %v427 = vpop.trf.xlu0
  %v428 = vpop.trf.xlu0
  %v429 = vpop.trf.xlu0
  %v430 = vpop.trf.xlu0
  %v431 = vpop.trf.xlu0
  %v432 = vpop.trf.xlu0
  %v433 = vpop.trf.xlu0
  %v434 = vpop.trf.xlu0
  %v435 = vpop.trf.xlu0
  %v436 = vpop.trf.xlu0
  %v437 = vpop.trf.xlu0
  %v438 = vpop.trf.xlu0
  %v439 = vpop.trf.xlu0
  %vm440 = vcmask 64512
  %v442 = vsel %vm440, %v424, 0
  %v445 = vsel %vm440, %v425, 0
  %v448 = vsel %vm440, %v426, 0
  %v451 = vsel %vm440, %v427, 0
  %v454 = vsel %vm440, %v428, 0
  %v457 = vsel %vm440, %v429, 0
  %v460 = vsel %vm440, %v430, 0
  %v463 = vsel %vm440, %v431, 0
  %465 = vmatpush.msra.mxu0 0.0
  %466 = vmatpush.msra.mxu0 0.0
  %467 = vmatpush.msra.mxu0 0.0
  %468 = vmatpush.msra.mxu0 0.0
  %469 = vmatpush.msra.mxu0 0.0
  %470 = vmatpush.msra.mxu0 0.0
  %471 = vmatpush.msra.mxu0 0.0
  %472 = vmatpush.msra.mxu0 0.0
  %473 = vmatpush.msra.mxu0 0.0
  %474 = vmatpush.msra.mxu0 0.0
  %475 = vmatpush.msra.mxu0 0.0
  %476 = vmatpush.msra.mxu0 0.0
  %477 = vmatpush.msra.mxu0 0.0
  %478 = vmatpush.msra.mxu0 0.0
  %479 = vmatpush.msra.mxu0 0.0
  %480 = vmatpush.msra.mxu0 %v407
  %481 = vmatmul.f32.gmra.mxu0 %v442
  %v482 = vpop.f32.mrf.mxu0
  %v483 = vadd.f32 0.0, %v482
  %484 = vmatmul.f32.gmra.mxu0 %v445
  %v485 = vpop.f32.mrf.mxu0
  %v486 = vadd.f32 0.0, %v485
  %487 = vmatmul.f32.gmra.mxu0 %v448
  %v488 = vpop.f32.mrf.mxu0
  %v489 = vadd.f32 0.0, %v488
  %490 = vmatmul.f32.gmra.mxu0 %v451
  %v491 = vpop.f32.mrf.mxu0
  %v492 = vadd.f32 0.0, %v491
  %493 = vmatmul.f32.gmra.mxu0 %v454
  %v494 = vpop.f32.mrf.mxu0
  %v495 = vadd.f32 0.0, %v494
  %496 = vmatmul.f32.gmra.mxu0 %v457
  %v497 = vpop.f32.mrf.mxu0
  %v498 = vadd.f32 0.0, %v497
  %499 = vmatmul.f32.gmra.mxu0 %v460
  %v500 = vpop.f32.mrf.mxu0
  %v501 = vadd.f32 0.0, %v500
  %502 = vmatmul.f32.gmra.mxu0 %v463
  %v503 = vpop.f32.mrf.mxu0
  %v504 = vadd.f32 0.0, %v503
  %505 = vdwg.mxu0
  %506 = vst.msk [vmem:[%s3] sm:$0xff] %vm401, %v483
  %507 = vst.msk [vmem:[%s3 + $0x8] sm:$0xff] %vm401, %v486
  %508 = vst.msk [vmem:[%s3 + $0x10] sm:$0xff] %vm401, %v489
  %509 = vst.msk [vmem:[%s3 + $0x18] sm:$0xff] %vm401, %v492
  %510 = vst.msk [vmem:[%s3 + $0x20] sm:$0xff] %vm401, %v495
  %511 = vst.msk [vmem:[%s3 + $0x28] sm:$0xff] %vm401, %v498
  %512 = vst.msk [vmem:[%s3 + $0x30] sm:$0xff] %vm401, %v501
  %513 = vst.msk [vmem:[%s3 + $0x38] sm:$0xff] %vm401, %v504
  // Predicated region
  $region10: #{tpu_custom_call.1} parent=0 // pred_check
    _
  $region11: #{tpu_custom_call.1} parent=0 // pred_check_branch
    %515 = sbr.rel (0) target = $region13
  $region12: #{tpu_custom_call.1} parent=0 // pred_region
    _
  $region13: #{tpu_custom_call.1} parent=0 // pred_fallthru
    _
  // Predicated region
  $region14: #{tpu_custom_call.1} parent=0 // pred_check
    _
  $region15: #{tpu_custom_call.1} parent=0 // pred_check_branch
    %517 = sbr.rel (0) target = $region17
  $region16: #{tpu_custom_call.1} parent=0 // pred_region
    _
  $region17: #{tpu_custom_call.1} parent=0 // pred_fallthru
    _
  // Predicated region
  $region18: #{tpu_custom_call.1} parent=0 // pred_check
    _
  $region19: #{tpu_custom_call.1} parent=0 // pred_check_branch
    %519 = sbr.rel (0) target = $region21
  $region20: #{tpu_custom_call.1} parent=0 // pred_region
    _
  $region21: #{tpu_custom_call.1} parent=0 // pred_fallthru
    _
  // Predicated region
  $region22: #{tpu_custom_call.1} parent=0 // pred_check
    _
  $region23: #{tpu_custom_call.1} parent=0 // pred_check_branch
    %521 = sbr.rel (0) target = $region25
  $region24: #{tpu_custom_call.1} parent=0 // pred_region
    _
  $region25: #{tpu_custom_call.1} parent=0 // pred_fallthru
    _

// kernel: tpu_custom_call.1
$region0: #{tpu_custom_call.1}
  #allocation0 [shape = 'u32[]', space=smem, size = 0x4, offset = 0x4, fixed_abs, tag = 'smem constant byte address 0x4 - core index']
  #allocation1 [shape = 'u32[72,128]{1,0:T(1,128)}', space=vmem, size = 0x9000, scoped, tag = 'internal scratch']
  %s0 = inlined_call_operand.hbm [shape: f32[2,16,16,16], index: 0, kind: input, shape index: {}]
  %s1 = inlined_call_operand.vmem [shape: f32[1,16], index: 1, kind: input, shape index: {}]
  %s2 = inlined_call_operand.vmem [shape: f32[1,16], index: 2, kind: input, shape index: {}]
  %s3 = inlined_call_operand.vmem [shape: bf16[16,4], index: 3, kind: input, shape index: {}]
  %s4 = inlined_call_operand.hbm [shape: bf16[2,4,16,16], index: 4, kind: output, shape index: {}]
  %s5 = sld [smem:[#allocation0]]
  $region53: #{tpu_custom_call.1} parent=0
    _
  %s7 = ssub.s32 1, %s5
  %s8 = scalar_select 0, %s7, %s5
  $region1: #{tpu_custom_call.1} parent=0
    #allocation2 [shape = 'u8[131072]{0}', space=vmem, size = 0x20000, scoped, tag = 'input window, operand 0']
    #allocation3 [shape = 's32[2]{0}', space=sflag, size = 0x8, scoped, tag = 'scoped memory for tpu_custom_call.1']
    #allocation4 [shape = 's32[2]{0}', space=sflag, size = 0x8, scoped, tag = 'scoped memory for tpu_custom_call.1']
    #allocation5 [shape = 'u8[16384]{0}', space=vmem, size = 0x4000, scoped, tag = 'output window, operand 0']
    %9 = vsyncpa [#allocation3], 0
    %s10 = scalar_lea.sflag [#allocation3], 1
    %11 = vsyncpa %s10, 0
    %12 = vsyncpa [#allocation4], 0
    %s13 = scalar_lea.sflag [#allocation4], 1
    %14 = vsyncpa %s13, 0
    loop: start=0, step=1, limit=6
    $region2: #{tpu_custom_call.1} parent=1 // loop_pre_header
      _
    $region3: #{tpu_custom_call.1} parent=1 // loop_header
      %s16 = sphi 0, %s20
      %p17 = scmp.ge.s32.totalorder %s16, 6
      %s23 = sphi 0, %s35
      %s24 = sphi 0, %s31
      %s25 = sphi 0, %s23
      %s26 = sphi 0, %s24
      %s27 = sphi 0, %s25
      %s28 = sphi 0, %s26
      %s40 = sphi 0, %s42
      %s43 = sphi 0, %s40
      %s44 = sphi 0, %s43
      %s60 = sphi 0, %s44
      %s64 = sphi 0, %s64
      %s66 = sphi 0, %s64
      %s67 = sphi 0, %s66
      %s81 = sphi 0, %s67
      %s85 = sphi 0, %s85
      %s87 = sphi 0, %s85
      %s88 = sphi 0, %s87
      %s102 = sphi 0, %s88
      %s106 = sphi 0, %s106
      %s108 = sphi 0, %s106
      %s109 = sphi 0, %s108
      %s123 = sphi 0, %s109
      %s131 = sphi 0, %s133
      %s134 = sphi 0, %s131
      %s135 = sphi 0, %s134
      %s151 = sphi 0, %s135
    $region4: #{tpu_custom_call.1} parent=1 // loop_header_branch
      %19 = sbr.rel (%p17) target = $region8
    $region5: #{tpu_custom_call.1} parent=1 // loop_body
      %s21 = ssub.s32 %s16, 1
      %s22 = ssub.s32 %s16, 2
      %s29 = sadd.s32 1, %s24
      %p30 = scmp.ge.s32.totalorder %s29, 2
      %s31 = scalar_select %p30, 0, %s29
      %s32 = sadd.s32 1, %s23
      %s33 = scalar_select %p30, %s32, %s23
      %p34 = scmp.ge.s32.totalorder %s33, 2
      %s35 = scalar_select %p34, 0, %s33
      %s36 = ssub.s32 %s23, %s35
      %s37 = ssub.s32 %s24, %s31
      %s38 = sor.u32 %s36, %s37
      %p39 = scmp.eq.s32.totalorder %s38, 0
      %s41 = sadd.s32 %s40, 1
      %s42 = scalar_select %p39, %s40, %s41
      %p45 = pneg %p39
      %p46 = scmp.eq.s32.totalorder %s16, 3
      %p47 = por %p45, %p46
      %p48 = scmp.ne.s32.totalorder %s40, %s43
      %p49 = scmp.eq.s32.totalorder %s16, 0
      %p50 = por %p48, %p49
      %p51 = scmp.ne.s32.totalorder %s40, %s43
      %p52 = scmp.eq.s32.totalorder %s21, 3
      %p53 = por %p51, %p52
      %p54 = scmp.ne.s32.totalorder %s43, %s44
      %p55 = scmp.eq.s32.totalorder %s21, 0
      %p56 = por %p54, %p55
      %p57 = scmp.ne.s32.totalorder %s43, %s44
      %p58 = scmp.eq.s32.totalorder %s22, 3
      %p59 = por %p57, %p58
      %p61 = scmp.ne.s32.totalorder %s44, %s60
      %p62 = scmp.eq.s32.totalorder %s22, 0
      %p63 = por %p61, %p62
      %s65 = sadd.s32 %s64, 1
      %p68 = scmp.eq.s32.totalorder %s16, 3
      %p69 = scmp.ne.s32.totalorder %s64, %s66
      %p70 = scmp.eq.s32.totalorder %s16, 0
      %p71 = por %p69, %p70
      %p72 = scmp.ne.s32.totalorder %s64, %s66
      %p73 = scmp.eq.s32.totalorder %s21, 3
      %p74 = por %p72, %p73
      %p75 = scmp.ne.s32.totalorder %s66, %s67
      %p76 = scmp.eq.s32.totalorder %s21, 0
      %p77 = por %p75, %p76
      %p78 = scmp.ne.s32.totalorder %s66, %s67
      %p79 = scmp.eq.s32.totalorder %s22, 3
      %p80 = por %p78, %p79
      %p82 = scmp.ne.s32.totalorder %s67, %s81
      %p83 = scmp.eq.s32.totalorder %s22, 0
      %p84 = por %p82, %p83
      %s86 = sadd.s32 %s85, 1
      %p89 = scmp.eq.s32.totalorder %s16, 3
      %p90 = scmp.ne.s32.totalorder %s85, %s87
      %p91 = scmp.eq.s32.totalorder %s16, 0
      %p92 = por %p90, %p91
      %p93 = scmp.ne.s32.totalorder %s85, %s87
      %p94 = scmp.eq.s32.totalorder %s21, 3
      %p95 = por %p93, %p94
      %p96 = scmp.ne.s32.totalorder %s87, %s88
      %p97 = scmp.eq.s32.totalorder %s21, 0
      %p98 = por %p96, %p97
      %p99 = scmp.ne.s32.totalorder %s87, %s88
      %p100 = scmp.eq.s32.totalorder %s22, 3
      %p101 = por %p99, %p100
      %p103 = scmp.ne.s32.totalorder %s88, %s102
      %p104 = scmp.eq.s32.totalorder %s22, 0
      %p105 = por %p103, %p104
      %s107 = sadd.s32 %s106, 1
      %p110 = scmp.eq.s32.totalorder %s16, 3
      %p111 = scmp.ne.s32.totalorder %s106, %s108
      %p112 = scmp.eq.s32.totalorder %s16, 0
      %p113 = por %p111, %p112
      %p114 = scmp.ne.s32.totalorder %s106, %s108
      %p115 = scmp.eq.s32.totalorder %s21, 3
      %p116 = por %p114, %p115
      %p117 = scmp.ne.s32.totalorder %s108, %s109
      %p118 = scmp.eq.s32.totalorder %s21, 0
      %p119 = por %p117, %p118
      %p120 = scmp.ne.s32.totalorder %s108, %s109
      %p121 = scmp.eq.s32.totalorder %s22, 3
      %p122 = por %p120, %p121
      %p124 = scmp.ne.s32.totalorder %s109, %s123
      %p125 = scmp.eq.s32.totalorder %s22, 0
      %p126 = por %p124, %p125
      %s127 = ssub.s32 %s23, %s35
      %s128 = ssub.s32 %s24, %s31
      %s129 = sor.u32 %s127, %s128
      %p130 = scmp.eq.s32.totalorder %s129, 0
      %s132 = sadd.s32 %s131, 1
      %s133 = scalar_select %p130, %s131, %s132
      %p136 = pneg %p130
      %p137 = scmp.eq.s32.totalorder %s16, 3
      %p138 = por %p136, %p137
      %p139 = scmp.ne.s32.totalorder %s131, %s134
      %p140 = scmp.eq.s32.totalorder %s16, 0
      %p141 = por %p139, %p140
      %p142 = scmp.ne.s32.totalorder %s131, %s134
      %p143 = scmp.eq.s32.totalorder %s21, 3
      %p144 = por %p142, %p143
      %p145 = scmp.ne.s32.totalorder %s134, %s135
      %p146 = scmp.eq.s32.totalorder %s21, 0
      %p147 = por %p145, %p146
      %p148 = scmp.ne.s32.totalorder %s134, %s135
      %p149 = scmp.eq.s32.totalorder %s22, 3
      %p150 = por %p148, %p149
      %p152 = scmp.ne.s32.totalorder %s135, %s151
      %p153 = scmp.eq.s32.totalorder %s22, 0
      %p154 = por %p152, %p153
      %p155 = scmp.le.s32.totalorder 1, %s16
      %p156 = scmp.lt.s32.totalorder %s16, 5
      %p157 = pnand %p155, %p156
      %p158 = pneg %p157
      // Predicated region
      $region9: #{tpu_custom_call.1} parent=5 // pred_check
        _
      $region10: #{tpu_custom_call.1} parent=5 // pred_check_branch
        %160 = sbr.rel (%p157) target = $region12
      $region11: #{tpu_custom_call.1} parent=5 // pred_region
        %s161 = ssub.s32 %s16, 1
        // Predicated region
        $region13: #{tpu_custom_call.1} parent=11 // pred_check
          %p162 = pneg %p77
        $region14: #{tpu_custom_call.1} parent=11 // pred_check_branch
          %164 = sbr.rel (%p162) target = $region16
        $region15: #{tpu_custom_call.1} parent=11 // pred_region
          _
        $region16: #{tpu_custom_call.1} parent=11 // pred_fallthru
          _
        // Predicated region
        $region17: #{tpu_custom_call.1} parent=11 // pred_check
          %p165 = pneg %p98
        $region18: #{tpu_custom_call.1} parent=11 // pred_check_branch
          %167 = sbr.rel (%p165) target = $region20
        $region19: #{tpu_custom_call.1} parent=11 // pred_region
          _
        $region20: #{tpu_custom_call.1} parent=11 // pred_fallthru
          _
        // Predicated region
        $region21: #{tpu_custom_call.1} parent=11 // pred_check
          %p168 = pneg %p119
        $region22: #{tpu_custom_call.1} parent=11 // pred_check_branch
          %170 = sbr.rel (%p168) target = $region24
        $region23: #{tpu_custom_call.1} parent=11 // pred_region
          _
        $region24: #{tpu_custom_call.1} parent=11 // pred_fallthru
          _
      $region12: #{tpu_custom_call.1} parent=5 // pred_fallthru
        _
      %p171 = scmp.lt.s32.totalorder %s16, 4
      // Predicated region
      $region25: #{tpu_custom_call.1} parent=5 // pred_check
        %p172 = pneg %p171
      $region26: #{tpu_custom_call.1} parent=5 // pred_check_branch
        %174 = sbr.rel (%p172) target = $region28
      $region27: #{tpu_custom_call.1} parent=5 // pred_region
        // Predicated region
        $region29: #{tpu_custom_call.1} parent=27 // pred_check
          %p175 = pneg %p50
        $region30: #{tpu_custom_call.1} parent=27 // pred_check_branch
          %177 = sbr.rel (%p175) target = $region32
        $region31: #{tpu_custom_call.1} parent=27 // pred_region
          %s178 = sand.u32 %s40, 1
          %s179 = scalar_lea.sflag [#allocation3], %s178
          %s180 = sand.u32 %s40, 1
          %s181 = smul.addr %s180, 128
          %s182 = scalar_lea.vmem [#allocation2], %s181
          %s183 = smul.u32 8, %s24
          %185 = vsyncadd %s179, 0
          %s186 = smul.addr %s183, 2
          %s187 = smul.addr %s23, 32
          %s188 = sadd.s32 %s186, %s187
          %s189 = smul.addr %s188, 8
          %s190 = scalar_lea.hbm %s0, %s189
          %s191 = sshll.u32 %s190, 4
          %s192 = int_to_ptr.hbm [resolvable:$true] %s191
          %s193 = sshll.u32 %s182, 4
          %s194 = int_to_ptr.vmem [resolvable:$true] %s193
          %199 = dma.hbm_to_vmem [thread:$0]  %s192, 2048, %s194, %s179, 128, 128, 8
        $region32: #{tpu_custom_call.1} parent=27 // pred_fallthru
          _
      $region28: #{tpu_custom_call.1} parent=5 // pred_fallthru
        _
      %p200 = scmp.le.s32.totalorder 1, %s16
      %p201 = scmp.lt.s32.totalorder %s16, 5
      %p202 = pnand %p200, %p201
      %p203 = pneg %p202
      // Predicated region
      $region33: #{tpu_custom_call.1} parent=5 // pred_check
        _
      $region34: #{tpu_custom_call.1} parent=5 // pred_check_branch
        %205 = sbr.rel (%p202) target = $region36
      $region35: #{tpu_custom_call.1} parent=5 // pred_region
        %s206 = ssub.s32 %s16, 1
        %s207 = sand.u32 %s43, 1
        %s208 = scalar_lea.sflag [#allocation3], %s207
        %s209 = sand.u32 %s43, 1
        %s210 = smul.addr %s209, 128
        %s211 = scalar_lea.vmem [#allocation2], %s210
        // Predicated region
        $region37: #{tpu_custom_call.1} parent=35 // pred_check
          %p212 = pneg %p56
        $region38: #{tpu_custom_call.1} parent=35 // pred_check_branch
          %214 = sbr.rel (%p212) target = $region40
        $region39: #{tpu_custom_call.1} parent=35 // pred_region
          %216 = dma.done %s208, 2048
        $region40: #{tpu_custom_call.1} parent=35 // pred_fallthru
          _
        %s217 = sand.u32 %s43, 1
        %s218 = scalar_lea.sflag [#allocation3], %s217
        %s219 = sand.u32 %s43, 1
        %s220 = smul.addr %s219, 128
        %s221 = scalar_lea.vmem [#allocation2], %s220
        %p222 = pneg %p56
        %p223 = pneg %p53
        %p224 = pneg %p77
        %p225 = pneg %p74
        %p226 = pneg %p98
        %p227 = pneg %p95
        %p228 = pneg %p119
        %p229 = pneg %p116
        %p230 = pneg %p147
        %p231 = pneg %p144
        %s232 = sand.u32 %s134, 1
        %s233 = scalar_lea.sflag [#allocation4], %s232
        %s234 = sand.u32 %s134, 1
        %s235 = smul.addr %s234, 16
        %s236 = scalar_lea.vmem [#allocation5], %s235
        %s237 = smul.u32 8, %s26
        %v239 = vld [vmem:[%s211] sm:$0xff]
        %v240 = vld [vmem:[%s211 + $0x8] sm:$0xff]
        %v241 = vld [vmem:[%s211 + $0x10] sm:$0xff]
        %v242 = vld [vmem:[%s211 + $0x18] sm:$0xff]
        %v243 = vld [vmem:[%s211 + $0x20] sm:$0xff]
        %v244 = vld [vmem:[%s211 + $0x28] sm:$0xff]
        %v245 = vld [vmem:[%s211 + $0x30] sm:$0xff]
        %v246 = vld [vmem:[%s211 + $0x38] sm:$0xff]
        %v247 = vld [vmem:[%s211 + $0x40] sm:$0xff]
        %v248 = vld [vmem:[%s211 + $0x48] sm:$0xff]
        %v249 = vld [vmem:[%s211 + $0x50] sm:$0xff]
        %v250 = vld [vmem:[%s211 + $0x58] sm:$0xff]
        %v251 = vld [vmem:[%s211 + $0x60] sm:$0xff]
        %v252 = vld [vmem:[%s211 + $0x68] sm:$0xff]
        %v253 = vld [vmem:[%s211 + $0x70] sm:$0xff]
        %v254 = vld [vmem:[%s211 + $0x78] sm:$0xff]
        %v255 = vld [vmem:[%s1] sm:$0x1]
        %v256 = vld [vmem:[%s2] sm:$0x1]
        %vm257 = vcmask 130048
        %v258 = vsel %vm257, %v239, 0.0
        %259 = vadd.xlane.f32.xlu0 %v258
        %v260 = vpop.xlane.xlu0 %259
        %v261 = vsel %vm257, %v240, 0.0
        %262 = vadd.xlane.f32.xlu0 %v261
        %v263 = vpop.xlane.xlu0 %262
        %v264 = vsel %vm257, %v241, 0.0
        %265 = vadd.xlane.f32.xlu0 %v264
        %v266 = vpop.xlane.xlu0 %265
        %v267 = vsel %vm257, %v242, 0.0
        %268 = vadd.xlane.f32.xlu0 %v267
        %v269 = vpop.xlane.xlu0 %268
        %v270 = vsel %vm257, %v243, 0.0
        %271 = vadd.xlane.f32.xlu0 %v270
        %v272 = vpop.xlane.xlu0 %271
        %v273 = vsel %vm257, %v244, 0.0
        %274 = vadd.xlane.f32.xlu0 %v273
        %v275 = vpop.xlane.xlu0 %274
        %v276 = vsel %vm257, %v245, 0.0
        %277 = vadd.xlane.f32.xlu0 %v276
        %v278 = vpop.xlane.xlu0 %277
        %v279 = vsel %vm257, %v246, 0.0
        %280 = vadd.xlane.f32.xlu0 %v279
        %v281 = vpop.xlane.xlu0 %280
        %v282 = vsel %vm257, %v247, 0.0
        %283 = vadd.xlane.f32.xlu0 %v282
        %v284 = vpop.xlane.xlu0 %283
        %v285 = vsel %vm257, %v248, 0.0
        %286 = vadd.xlane.f32.xlu0 %v285
        %v287 = vpop.xlane.xlu0 %286
        %v288 = vsel %vm257, %v249, 0.0
        %289 = vadd.xlane.f32.xlu0 %v288
        %v290 = vpop.xlane.xlu0 %289
        %v291 = vsel %vm257, %v250, 0.0
        %292 = vadd.xlane.f32.xlu0 %v291
        %v293 = vpop.xlane.xlu0 %292
        %v294 = vsel %vm257, %v251, 0.0
        %295 = vadd.xlane.f32.xlu0 %v294
        %v296 = vpop.xlane.xlu0 %295
        %v297 = vsel %vm257, %v252, 0.0
        %298 = vadd.xlane.f32.xlu0 %v297
        %v299 = vpop.xlane.xlu0 %298
        %v300 = vsel %vm257, %v253, 0.0
        %301 = vadd.xlane.f32.xlu0 %v300
        %v302 = vpop.xlane.xlu0 %301
        %v303 = vsel %vm257, %v254, 0.0
        %304 = vadd.xlane.f32.xlu0 %v303
        %v305 = vpop.xlane.xlu0 %304
        %v306 = vrcp.pop 16.0
        %v307 = vmul.f32 16.0, %v306
        %v308 = vsub.f32 1.0, %v307
        %v309 = vmul.f32 %v306, %v308
        %v310 = vadd.f32 %v306, %v309
        %vm311 = vweird.f32 %v306
        %v312 = vsel %vm311, %v306, %v310
        %v313 = vmul.f32 %v260, %v312
        %v314 = vmul.f32 %v263, %v312
        %v315 = vmul.f32 %v266, %v312
        %v316 = vmul.f32 %v269, %v312
        %v317 = vmul.f32 %v272, %v312
        %v318 = vmul.f32 %v275, %v312
        %v319 = vmul.f32 %v278, %v312
        %v320 = vmul.f32 %v281, %v312
        %v321 = vmul.f32 %v284, %v312
        %v322 = vmul.f32 %v287, %v312
        %v323 = vmul.f32 %v290, %v312
        %v324 = vmul.f32 %v293, %v312
        %v325 = vmul.f32 %v296, %v312
        %v326 = vmul.f32 %v299, %v312
        %v327 = vmul.f32 %v302, %v312
        %v328 = vmul.f32 %v305, %v312
        %v329 = vsub.f32 %v239, %v313
        %v330 = vsub.f32 %v240, %v314
        %v331 = vsub.f32 %v241, %v315
        %v332 = vsub.f32 %v242, %v316
        %v333 = vsub.f32 %v243, %v317
        %v334 = vsub.f32 %v244, %v318
        %v335 = vsub.f32 %v245, %v319
        %v336 = vsub.f32 %v246, %v320
        %v337 = vsub.f32 %v247, %v321
        %v338 = vsub.f32 %v248, %v322
        %v339 = vsub.f32 %v249, %v323
        %v340 = vsub.f32 %v250, %v324
        %v341 = vsub.f32 %v251, %v325
        %v342 = vsub.f32 %v252, %v326
        %v343 = vsub.f32 %v253, %v327
        %v344 = vsub.f32 %v254, %v328
        %v345 = vmul.f32 %v329, %v329
        %v346 = vmul.f32 %v330, %v330
        %v347 = vmul.f32 %v331, %v331
        %v348 = vmul.f32 %v332, %v332
        %v349 = vmul.f32 %v333, %v333
        %v350 = vmul.f32 %v334, %v334
        %v351 = vmul.f32 %v335, %v335
        %v352 = vmul.f32 %v336, %v336
        %v353 = vmul.f32 %v337, %v337
        %v354 = vmul.f32 %v338, %v338
        %v355 = vmul.f32 %v339, %v339
        %v356 = vmul.f32 %v340, %v340
        %v357 = vmul.f32 %v341, %v341
        %v358 = vmul.f32 %v342, %v342
        %v359 = vmul.f32 %v343, %v343
        %v360 = vmul.f32 %v344, %v344
        %v361 = vsel %vm257, %v345, 0.0
        %362 = vadd.xlane.f32.xlu0 %v361
        %v363 = vpop.xlane.xlu0 %362
        %v364 = vsel %vm257, %v346, 0.0
        %365 = vadd.xlane.f32.xlu0 %v364
        %v366 = vpop.xlane.xlu0 %365
        %v367 = vsel %vm257, %v347, 0.0
        %368 = vadd.xlane.f32.xlu0 %v367
        %v369 = vpop.xlane.xlu0 %368
        %v370 = vsel %vm257, %v348, 0.0
        %371 = vadd.xlane.f32.xlu0 %v370
        %v372 = vpop.xlane.xlu0 %371
        %v373 = vsel %vm257, %v349, 0.0
        %374 = vadd.xlane.f32.xlu0 %v373
        %v375 = vpop.xlane.xlu0 %374
        %v376 = vsel %vm257, %v350, 0.0
        %377 = vadd.xlane.f32.xlu0 %v376
        %v378 = vpop.xlane.xlu0 %377
        %v379 = vsel %vm257, %v351, 0.0
        %380 = vadd.xlane.f32.xlu0 %v379
        %v381 = vpop.xlane.xlu0 %380
        %v382 = vsel %vm257, %v352, 0.0
        %383 = vadd.xlane.f32.xlu0 %v382
        %v384 = vpop.xlane.xlu0 %383
        %v385 = vsel %vm257, %v353, 0.0
        %386 = vadd.xlane.f32.xlu0 %v385
        %v387 = vpop.xlane.xlu0 %386
        %v388 = vsel %vm257, %v354, 0.0
        %389 = vadd.xlane.f32.xlu0 %v388
        %v390 = vpop.xlane.xlu0 %389
        %v391 = vsel %vm257, %v355, 0.0
        %392 = vadd.xlane.f32.xlu0 %v391
        %v393 = vpop.xlane.xlu0 %392
        %v394 = vsel %vm257, %v356, 0.0
        %395 = vadd.xlane.f32.xlu0 %v394
        %v396 = vpop.xlane.xlu0 %395
        %v397 = vsel %vm257, %v357, 0.0
        %398 = vadd.xlane.f32.xlu0 %v397
        %v399 = vpop.xlane.xlu0 %398
        %v400 = vsel %vm257, %v358, 0.0
        %401 = vadd.xlane.f32.xlu0 %v400
        %v402 = vpop.xlane.xlu0 %401
        %v403 = vsel %vm257, %v359, 0.0
        %404 = vadd.xlane.f32.xlu0 %v403
        %v405 = vpop.xlane.xlu0 %404
        %v406 = vsel %vm257, %v360, 0.0
        %407 = vadd.xlane.f32.xlu0 %v406
        %v408 = vpop.xlane.xlu0 %407
        %v409 = vmul.f32 %v363, %v312
        %v410 = vmul.f32 %v366, %v312
        %v411 = vmul.f32 %v369, %v312
        %v412 = vmul.f32 %v372, %v312
        %v413 = vmul.f32 %v375, %v312
        %v414 = vmul.f32 %v378, %v312
        %v415 = vmul.f32 %v381, %v312
        %v416 = vmul.f32 %v384, %v312
        %v417 = vmul.f32 %v387, %v312
        %v418 = vmul.f32 %v390, %v312
        %v419 = vmul.f32 %v393, %v312
        %v420 = vmul.f32 %v396, %v312
        %v421 = vmul.f32 %v399, %v312
        %v422 = vmul.f32 %v402, %v312
        %v423 = vmul.f32 %v405, %v312
        %v424 = vmul.f32 %v408, %v312
        %v425 = vadd.f32 %v409, 1e-05
        %v426 = vadd.f32 %v410, 1e-05
        %v427 = vadd.f32 %v411, 1e-05
        %v428 = vadd.f32 %v412, 1e-05
        %v429 = vadd.f32 %v413, 1e-05
        %v430 = vadd.f32 %v414, 1e-05
        %v431 = vadd.f32 %v415, 1e-05
        %v432 = vadd.f32 %v416, 1e-05
        %v433 = vadd.f32 %v417, 1e-05
        %v434 = vadd.f32 %v418, 1e-05
        %v435 = vadd.f32 %v419, 1e-05
        %v436 = vadd.f32 %v420, 1e-05
        %v437 = vadd.f32 %v421, 1e-05
        %v438 = vadd.f32 %v422, 1e-05
        %v439 = vadd.f32 %v423, 1e-05
        %v440 = vadd.f32 %v424, 1e-05
        %v441 = vrsqrt.pop %v425
        %v442 = vmul.f32 %v441, %v425
        %v443 = vmul.f32 %v442, %v441
        %v444 = vmul.f32 0.5, %v443
        %v445 = vsub.f32 1.5, %v444
        %v446 = vmul.f32 %v441, %v445
        %vm447 = vweird.f32 %v425
        %vm448 = vweird.f32 %v441
        %vm449 = vmor %vm447, %vm448
        %v450 = vsel %vm449, %v441, %v446
        %v451 = vrsqrt.pop %v426
        %v452 = vmul.f32 %v451, %v426
        %v453 = vmul.f32 %v452, %v451
        %v454 = vmul.f32 0.5, %v453
        %v455 = vsub.f32 1.5, %v454
        %v456 = vmul.f32 %v451, %v455
        %vm457 = vweird.f32 %v426
        %vm458 = vweird.f32 %v451
        %vm459 = vmor %vm457, %vm458
        %v460 = vsel %vm459, %v451, %v456
        %v461 = vrsqrt.pop %v427
        %v462 = vmul.f32 %v461, %v427
        %v463 = vmul.f32 %v462, %v461
        %v464 = vmul.f32 0.5, %v463
        %v465 = vsub.f32 1.5, %v464
        %v466 = vmul.f32 %v461, %v465
        %vm467 = vweird.f32 %v427
        %vm468 = vweird.f32 %v461
        %vm469 = vmor %vm467, %vm468
        %v470 = vsel %vm469, %v461, %v466
        %v471 = vrsqrt.pop %v428
        %v472 = vmul.f32 %v471, %v428
        %v473 = vmul.f32 %v472, %v471
        %v474 = vmul.f32 0.5, %v473
        %v475 = vsub.f32 1.5, %v474
        %v476 = vmul.f32 %v471, %v475
        %vm477 = vweird.f32 %v428
        %vm478 = vweird.f32 %v471
        %vm479 = vmor %vm477, %vm478
        %v480 = vsel %vm479, %v471, %v476
        %v481 = vrsqrt.pop %v429
        %v482 = vmul.f32 %v481, %v429
        %v483 = vmul.f32 %v482, %v481
        %v484 = vmul.f32 0.5, %v483
        %v485 = vsub.f32 1.5, %v484
        %v486 = vmul.f32 %v481, %v485
        %vm487 = vweird.f32 %v429
        %vm488 = vweird.f32 %v481
        %vm489 = vmor %vm487, %vm488
        %v490 = vsel %vm489, %v481, %v486
        %v491 = vrsqrt.pop %v430
        %v492 = vmul.f32 %v491, %v430
        %v493 = vmul.f32 %v492, %v491
        %v494 = vmul.f32 0.5, %v493
        %v495 = vsub.f32 1.5, %v494
        %v496 = vmul.f32 %v491, %v495
        %vm497 = vweird.f32 %v430
        %vm498 = vweird.f32 %v491
        %vm499 = vmor %vm497, %vm498
        %v500 = vsel %vm499, %v491, %v496
        %v501 = vrsqrt.pop %v431
        %v502 = vmul.f32 %v501, %v431
        %v503 = vmul.f32 %v502, %v501
        %v504 = vmul.f32 0.5, %v503
        %v505 = vsub.f32 1.5, %v504
        %v506 = vmul.f32 %v501, %v505
        %vm507 = vweird.f32 %v431
        %vm508 = vweird.f32 %v501
        %vm509 = vmor %vm507, %vm508
        %v510 = vsel %vm509, %v501, %v506
        %v511 = vrsqrt.pop %v432
        %v512 = vmul.f32 %v511, %v432
        %v513 = vmul.f32 %v512, %v511
        %v514 = vmul.f32 0.5, %v513
        %v515 = vsub.f32 1.5, %v514
        %v516 = vmul.f32 %v511, %v515
        %vm517 = vweird.f32 %v432
        %vm518 = vweird.f32 %v511
        %vm519 = vmor %vm517, %vm518
        %v520 = vsel %vm519, %v511, %v516
        %v521 = vrsqrt.pop %v433
        %v522 = vmul.f32 %v521, %v433
        %v523 = vmul.f32 %v522, %v521
        %v524 = vmul.f32 0.5, %v523
        %v525 = vsub.f32 1.5, %v524
        %v526 = vmul.f32 %v521, %v525
        %vm527 = vweird.f32 %v433
        %vm528 = vweird.f32 %v521
        %vm529 = vmor %vm527, %vm528
        %v530 = vsel %vm529, %v521, %v526
        %v531 = vrsqrt.pop %v434
        %v532 = vmul.f32 %v531, %v434
        %v533 = vmul.f32 %v532, %v531
        %v534 = vmul.f32 0.5, %v533
        %v535 = vsub.f32 1.5, %v534
        %v536 = vmul.f32 %v531, %v535
        %vm537 = vweird.f32 %v434
        %vm538 = vweird.f32 %v531
        %vm539 = vmor %vm537, %vm538
        %v540 = vsel %vm539, %v531, %v536
        %v541 = vrsqrt.pop %v435
        %v542 = vmul.f32 %v541, %v435
        %v543 = vmul.f32 %v542, %v541
        %v544 = vmul.f32 0.5, %v543
        %v545 = vsub.f32 1.5, %v544
        %v546 = vmul.f32 %v541, %v545
        %vm547 = vweird.f32 %v435
        %vm548 = vweird.f32 %v541
        %vm549 = vmor %vm547, %vm548
        %v550 = vsel %vm549, %v541, %v546
        %v551 = vrsqrt.pop %v436
        %v552 = vmul.f32 %v551, %v436
        %v553 = vmul.f32 %v552, %v551
        %v554 = vmul.f32 0.5, %v553
        %v555 = vsub.f32 1.5, %v554
        %v556 = vmul.f32 %v551, %v555
        %vm557 = vweird.f32 %v436
        %vm558 = vweird.f32 %v551
        %vm559 = vmor %vm557, %vm558
        %v560 = vsel %vm559, %v551, %v556
        %v561 = vrsqrt.pop %v437
        %v562 = vmul.f32 %v561, %v437
        %v563 = vmul.f32 %v562, %v561
        %v564 = vmul.f32 0.5, %v563
        %v565 = vsub.f32 1.5, %v564
        %v566 = vmul.f32 %v561, %v565
        %vm567 = vweird.f32 %v437
        %vm568 = vweird.f32 %v561
        %vm569 = vmor %vm567, %vm568
        %v570 = vsel %vm569, %v561, %v566
        %v571 = vrsqrt.pop %v438
        %v572 = vmul.f32 %v571, %v438
        %v573 = vmul.f32 %v572, %v571
        %v574 = vmul.f32 0.5, %v573
        %v575 = vsub.f32 1.5, %v574
        %v576 = vmul.f32 %v571, %v575
        %vm577 = vweird.f32 %v438
        %vm578 = vweird.f32 %v571
        %vm579 = vmor %vm577, %vm578
        %v580 = vsel %vm579, %v571, %v576
        %v581 = vrsqrt.pop %v439
        %v582 = vmul.f32 %v581, %v439
        %v583 = vmul.f32 %v582, %v581
        %v584 = vmul.f32 0.5, %v583
        %v585 = vsub.f32 1.5, %v584
        %v586 = vmul.f32 %v581, %v585
        %vm587 = vweird.f32 %v439
        %vm588 = vweird.f32 %v581
        %vm589 = vmor %vm587, %vm588
        %v590 = vsel %vm589, %v581, %v586
        %v591 = vrsqrt.pop %v440
        %v592 = vmul.f32 %v591, %v440
        %v593 = vmul.f32 %v592, %v591
        %v594 = vmul.f32 0.5, %v593
        %v595 = vsub.f32 1.5, %v594
        %v596 = vmul.f32 %v591, %v595
        %vm597 = vweird.f32 %v440
        %vm598 = vweird.f32 %v591
        %vm599 = vmor %vm597, %vm598
        %v600 = vsel %vm599, %v591, %v596
        %v601 = vmul.f32 %v329, %v450
        %v602 = vmul.f32 %v330, %v460
        %v603 = vmul.f32 %v331, %v470
        %v604 = vmul.f32 %v332, %v480
        %v605 = vmul.f32 %v333, %v490
        %v606 = vmul.f32 %v334, %v500
        %v607 = vmul.f32 %v335, %v510
        %v608 = vmul.f32 %v336, %v520
        %v609 = vmul.f32 %v337, %v530
        %v610 = vmul.f32 %v338, %v540
        %v611 = vmul.f32 %v339, %v550
        %v612 = vmul.f32 %v340, %v560
        %v613 = vmul.f32 %v341, %v570
        %v614 = vmul.f32 %v342, %v580
        %v615 = vmul.f32 %v343, %v590
        %v616 = vmul.f32 %v344, %v600
        %v618 = vperm.slane %v255, 0
        %v620 = vmul.f32 %v601, %v618
        %v621 = vmul.f32 %v602, %v618
        %v622 = vmul.f32 %v603, %v618
        %v623 = vmul.f32 %v604, %v618
        %v624 = vmul.f32 %v605, %v618
        %v625 = vmul.f32 %v606, %v618
        %v626 = vmul.f32 %v607, %v618
        %v627 = vmul.f32 %v608, %v618
        %v628 = vmul.f32 %v609, %v618
        %v629 = vmul.f32 %v610, %v618
        %v630 = vmul.f32 %v611, %v618
        %v631 = vmul.f32 %v612, %v618
        %v632 = vmul.f32 %v613, %v618
        %v633 = vmul.f32 %v614, %v618
        %v634 = vmul.f32 %v615, %v618
        %v635 = vmul.f32 %v616, %v618
        %v637 = vperm.slane %v256, 0
        %v639 = vadd.f32 %v620, %v637
        %v640 = vadd.f32 %v621, %v637
        %v641 = vadd.f32 %v622, %v637
        %v642 = vadd.f32 %v623, %v637
        %v643 = vadd.f32 %v624, %v637
        %v644 = vadd.f32 %v625, %v637
        %v645 = vadd.f32 %v626, %v637
        %v646 = vadd.f32 %v627, %v637
        %v647 = vadd.f32 %v628, %v637
        %v648 = vadd.f32 %v629, %v637
        %v649 = vadd.f32 %v630, %v637
        %v650 = vadd.f32 %v631, %v637
        %v651 = vadd.f32 %v632, %v637
        %v652 = vadd.f32 %v633, %v637
        %v653 = vadd.f32 %v634, %v637
        %v654 = vadd.f32 %v635, %v637
        %v655 = vpack.c.bf16 %v640, %v639
        %v656 = vpack.c.bf16 %v642, %v641
        %v657 = vpack.c.bf16 %v644, %v643
        %v658 = vpack.c.bf16 %v646, %v645
        %v659 = vpack.c.bf16 %v648, %v647
        %v660 = vpack.c.bf16 %v650, %v649
        %v661 = vpack.c.bf16 %v652, %v651
        %v662 = vpack.c.bf16 %v654, %v653
        %v663 = vld [vmem:[%s3] sm:$0xf]
        %v664 = vld [vmem:[%s3 + $0x4] sm:$0xf]
        %v667 = vunpack.c.l.b16 %v663
        %v668 = vunpack.c.l.b16 %v664
        %v669 = vpack.c.b16 %v668, %v667
        %v672 = vsel %vm257, %v655, 0
        %v675 = vsel %vm257, %v656, 0
        %v678 = vsel %vm257, %v657, 0
        %v681 = vsel %vm257, %v658, 0
        %v684 = vsel %vm257, %v659, 0
        %v687 = vsel %vm257, %v660, 0
        %v690 = vsel %vm257, %v661, 0
        %v693 = vsel %vm257, %v662, 0
        %695 = vmatpush.bf16.msra.mxu0 0
        %696 = vmatpush.bf16.msra.mxu0 0
        %697 = vmatpush.bf16.msra.mxu0 0
        %698 = vmatpush.bf16.msra.mxu0 0
        %699 = vmatpush.bf16.msra.mxu0 0
        %700 = vmatpush.bf16.msra.mxu0 0
        %701 = vmatpush.bf16.msra.mxu0 0
        %702 = vmatpush.bf16.msra.mxu0 %v669
        %703 = vmatmul.bf16.gmra.mxu0 %v672
        %v704 = vpop.f32.mrf.mxu0
        %v705 = vadd.f32 0.0, %v704
        %v706 = vpop.f32.mrf.mxu0
        %v707 = vadd.f32 0.0, %v706
        %708 = vmatmul.bf16.gmra.mxu0 %v675
        %v709 = vpop.f32.mrf.mxu0
        %v710 = vadd.f32 0.0, %v709
        %v711 = vpop.f32.mrf.mxu0
        %v712 = vadd.f32 0.0, %v711
        %713 = vmatmul.bf16.gmra.mxu0 %v678
        %v714 = vpop.f32.mrf.mxu0
        %v715 = vadd.f32 0.0, %v714
        %v716 = vpop.f32.mrf.mxu0
        %v717 = vadd.f32 0.0, %v716
        %718 = vmatmul.bf16.gmra.mxu0 %v681
        %v719 = vpop.f32.mrf.mxu0
        %v720 = vadd.f32 0.0, %v719
        %v721 = vpop.f32.mrf.mxu0
        %v722 = vadd.f32 0.0, %v721
        %723 = vmatmul.bf16.gmra.mxu0 %v684
        %v724 = vpop.f32.mrf.mxu0
        %v725 = vadd.f32 0.0, %v724
        %v726 = vpop.f32.mrf.mxu0
        %v727 = vadd.f32 0.0, %v726
        %728 = vmatmul.bf16.gmra.mxu0 %v687
        %v729 = vpop.f32.mrf.mxu0
        %v730 = vadd.f32 0.0, %v729
        %v731 = vpop.f32.mrf.mxu0
        %v732 = vadd.f32 0.0, %v731
        %733 = vmatmul.bf16.gmra.mxu0 %v690
        %v734 = vpop.f32.mrf.mxu0
        %v735 = vadd.f32 0.0, %v734
        %v736 = vpop.f32.mrf.mxu0
        %v737 = vadd.f32 0.0, %v736
        %738 = vmatmul.bf16.gmra.mxu0 %v693
        %v739 = vpop.f32.mrf.mxu0
        %v740 = vadd.f32 0.0, %v739
        %v741 = vpop.f32.mrf.mxu0
        %v742 = vadd.f32 0.0, %v741
        %743 = vdwg.mxu0
        %v744 = vpack.c.bf16 %v705, %v705
        %v745 = vpack.c.bf16 %v707, %v707
        %v746 = vpack.c.bf16 %v710, %v710
        %v747 = vpack.c.bf16 %v712, %v712
        %v748 = vpack.c.bf16 %v715, %v715
        %v749 = vpack.c.bf16 %v717, %v717
        %v750 = vpack.c.bf16 %v720, %v720
        %v751 = vpack.c.bf16 %v722, %v722
        %v752 = vpack.c.bf16 %v725, %v725
        %v753 = vpack.c.bf16 %v727, %v727
        %v754 = vpack.c.bf16 %v730, %v730
        %v755 = vpack.c.bf16 %v732, %v732
        %v756 = vpack.c.bf16 %v735, %v735
        %v757 = vpack.c.bf16 %v737, %v737
        %v758 = vpack.c.bf16 %v740, %v740
        %v759 = vpack.c.bf16 %v742, %v742
        %v776 = vunpack.c.l.b16 %v744
        %v777 = vunpack.c.l.b16 %v745
        %v778 = vunpack.c.l.b16 %v746
        %v779 = vunpack.c.l.b16 %v747
        %v780 = vunpack.c.l.b16 %v748
        %v781 = vunpack.c.l.b16 %v749
        %v782 = vunpack.c.l.b16 %v750
        %v783 = vunpack.c.l.b16 %v751
        %v784 = vunpack.c.l.b16 %v752
        %v785 = vunpack.c.l.b16 %v753
        %v786 = vunpack.c.l.b16 %v754
        %v787 = vunpack.c.l.b16 %v755
        %v788 = vunpack.c.l.b16 %v756
        %v789 = vunpack.c.l.b16 %v757
        %v790 = vunpack.c.l.b16 %v758
        %v791 = vunpack.c.l.b16 %v759
        %792 = vset.pattern.permute.xlu0 0
        %793 = vperm.xlu0 %792, %v776
        %v794 = vpop.permute.xlu0 %793
        %795 = vset.pattern.permute.xlu0 0
        %796 = vperm.xlu0 %795, %v777
        %v797 = vpop.permute.xlu0 %796
        %798 = vset.pattern.permute.xlu0 0
        %799 = vperm.xlu0 %798, %v778
        %v800 = vpop.permute.xlu0 %799
        %801 = vset.pattern.permute.xlu0 0
        %802 = vperm.xlu0 %801, %v779
        %v803 = vpop.permute.xlu0 %802
        %804 = vset.pattern.permute.xlu0 0
        %805 = vperm.xlu0 %804, %v780
        %v806 = vpop.permute.xlu0 %805
        %807 = vset.pattern.permute.xlu0 0
        %808 = vperm.xlu0 %807, %v781
        %v809 = vpop.permute.xlu0 %808
        %810 = vset.pattern.permute.xlu0 0
        %811 = vperm.xlu0 %810, %v782
        %v812 = vpop.permute.xlu0 %811
        %813 = vset.pattern.permute.xlu0 0
        %814 = vperm.xlu0 %813, %v783
        %v815 = vpop.permute.xlu0 %814
        %816 = vset.pattern.permute.xlu0 0
        %817 = vperm.xlu0 %816, %v784
        %v818 = vpop.permute.xlu0 %817
        %819 = vset.pattern.permute.xlu0 0
        %820 = vperm.xlu0 %819, %v785
        %v821 = vpop.permute.xlu0 %820
        %822 = vset.pattern.permute.xlu0 0
        %823 = vperm.xlu0 %822, %v786
        %v824 = vpop.permute.xlu0 %823
        %825 = vset.pattern.permute.xlu0 0
        %826 = vperm.xlu0 %825, %v787
        %v827 = vpop.permute.xlu0 %826
        %828 = vset.pattern.permute.xlu0 0
        %829 = vperm.xlu0 %828, %v788
        %v830 = vpop.permute.xlu0 %829
        %831 = vset.pattern.permute.xlu0 0
        %832 = vperm.xlu0 %831, %v789
        %v833 = vpop.permute.xlu0 %832
        %834 = vset.pattern.permute.xlu0 0
        %835 = vperm.xlu0 %834, %v790
        %v836 = vpop.permute.xlu0 %835
        %837 = vset.pattern.permute.xlu0 0
        %838 = vperm.xlu0 %837, %v791
        %v839 = vpop.permute.xlu0 %838
        %v840 = vlaneseq
        %v841 = vand.u32 %v840, 127
        %v842 = vperm.slane %v794, %v841
        %v843 = vadd.s32 %v841, 4294967288
        %v844 = vperm.slane %v797, %v843
        %vm845 = vcmask 130112
        %v846 = vsel %vm845, %v844, %v842
        %v847 = vperm.slane %v800, %v841
        %v848 = vperm.slane %v803, %v843
        %v849 = vsel %vm845, %v848, %v847
        %v850 = vperm.slane %v806, %v841
        %v851 = vperm.slane %v809, %v843
        %v852 = vsel %vm845, %v851, %v850
        %v853 = vperm.slane %v812, %v841
        %v854 = vperm.slane %v815, %v843
        %v855 = vsel %vm845, %v854, %v853
        %v856 = vperm.slane %v818, %v841
        %v857 = vperm.slane %v821, %v843
        %v858 = vsel %vm845, %v857, %v856
        %v859 = vperm.slane %v824, %v841
        %v860 = vperm.slane %v827, %v843
        %v861 = vsel %vm845, %v860, %v859
        %v862 = vperm.slane %v830, %v841
        %v863 = vperm.slane %v833, %v843
        %v864 = vsel %vm845, %v863, %v862
        %v865 = vperm.slane %v836, %v841
        %v866 = vperm.slane %v839, %v843
        %v867 = vsel %vm845, %v866, %v865
        %vm868 = vcmask 1041409
        %v869 = vsel %vm868, %v849, %v846
        %vm870 = vcmask 1042434
        %v871 = vsel %vm870, %v852, %v869
        %vm872 = vcmask 1043459
        %v873 = vsel %vm872, %v855, %v871
        %vm874 = vcmask 1044484
        %v875 = vsel %vm874, %v858, %v873
        %vm876 = vcmask 1045509
        %v877 = vsel %vm876, %v861, %v875
        %vm878 = vcmask 1046534
        %v879 = vsel %vm878, %v864, %v877
        %vm880 = vcmask 1047559
        %v881 = vsel %vm880, %v867, %v879
        %v882 = vpack.c.b16 %v881, %v881
        %vm884 = vcmask 125952
        %885 = vst.msk [vmem:[%s236] sm:$0xf] %vm884, %v882
        %886 = vset.pattern.permute.xlu0 1
        %887 = vperm.xlu0 %886, %v776
        %v888 = vpop.permute.xlu0 %887
        %889 = vset.pattern.permute.xlu0 1
        %890 = vperm.xlu0 %889, %v777
        %v891 = vpop.permute.xlu0 %890
        %892 = vset.pattern.permute.xlu0 1
        %893 = vperm.xlu0 %892, %v778
        %v894 = vpop.permute.xlu0 %893
        %895 = vset.pattern.permute.xlu0 1
        %896 = vperm.xlu0 %895, %v779
        %v897 = vpop.permute.xlu0 %896
        %898 = vset.pattern.permute.xlu0 1
        %899 = vperm.xlu0 %898, %v780
        %v900 = vpop.permute.xlu0 %899
        %901 = vset.pattern.permute.xlu0 1
        %902 = vperm.xlu0 %901, %v781
        %v903 = vpop.permute.xlu0 %902
        %904 = vset.pattern.permute.xlu0 1
        %905 = vperm.xlu0 %904, %v782
        %v906 = vpop.permute.xlu0 %905
        %907 = vset.pattern.permute.xlu0 1
        %908 = vperm.xlu0 %907, %v783
        %v909 = vpop.permute.xlu0 %908
        %910 = vset.pattern.permute.xlu0 1
        %911 = vperm.xlu0 %910, %v784
        %v912 = vpop.permute.xlu0 %911
        %913 = vset.pattern.permute.xlu0 1
        %914 = vperm.xlu0 %913, %v785
        %v915 = vpop.permute.xlu0 %914
        %916 = vset.pattern.permute.xlu0 1
        %917 = vperm.xlu0 %916, %v786
        %v918 = vpop.permute.xlu0 %917
        %919 = vset.pattern.permute.xlu0 1
        %920 = vperm.xlu0 %919, %v787
        %v921 = vpop.permute.xlu0 %920
        %922 = vset.pattern.permute.xlu0 1
        %923 = vperm.xlu0 %922, %v788
        %v924 = vpop.permute.xlu0 %923
        %925 = vset.pattern.permute.xlu0 1
        %926 = vperm.xlu0 %925, %v789
        %v927 = vpop.permute.xlu0 %926
        %928 = vset.pattern.permute.xlu0 1
        %929 = vperm.xlu0 %928, %v790
        %v930 = vpop.permute.xlu0 %929
        %931 = vset.pattern.permute.xlu0 1
        %932 = vperm.xlu0 %931, %v791
        %v933 = vpop.permute.xlu0 %932
        %v934 = vperm.slane %v888, %v841
        %v935 = vperm.slane %v891, %v843
        %v936 = vsel %vm845, %v935, %v934
        %v937 = vperm.slane %v894, %v841
        %v938 = vperm.slane %v897, %v843
        %v939 = vsel %vm845, %v938, %v937
        %v940 = vperm.slane %v900, %v841
        %v941 = vperm.slane %v903, %v843
        %v942 = vsel %vm845, %v941, %v940
        %v943 = vperm.slane %v906, %v841
        %v944 = vperm.slane %v909, %v843
        %v945 = vsel %vm845, %v944, %v943
        %v946 = vperm.slane %v912, %v841
        %v947 = vperm.slane %v915, %v843
        %v948 = vsel %vm845, %v947, %v946
        %v949 = vperm.slane %v918, %v841
        %v950 = vperm.slane %v921, %v843
        %v951 = vsel %vm845, %v950, %v949
        %v952 = vperm.slane %v924, %v841
        %v953 = vperm.slane %v927, %v843
        %v954 = vsel %vm845, %v953, %v952
        %v955 = vperm.slane %v930, %v841
        %v956 = vperm.slane %v933, %v843
        %v957 = vsel %vm845, %v956, %v955
        %v958 = vsel %vm868, %v939, %v936
        %v959 = vsel %vm870, %v942, %v958
        %v960 = vsel %vm872, %v945, %v959
        %v961 = vsel %vm874, %v948, %v960
        %v962 = vsel %vm876, %v951, %v961
        %v963 = vsel %vm878, %v954, %v962
        %v964 = vsel %vm880, %v957, %v963
        %v965 = vpack.c.b16 %v964, %v964
        %s967 = scalar_lea.vmem %s236, 4 [#allocation5]
        %968 = vst.msk [vmem:[%s967] sm:$0xf] %vm884, %v965
        %969 = vset.pattern.permute.xlu0 2
        %970 = vperm.xlu0 %969, %v776
        %v971 = vpop.permute.xlu0 %970
        %972 = vset.pattern.permute.xlu0 2
        %973 = vperm.xlu0 %972, %v777
        %v974 = vpop.permute.xlu0 %973
        %975 = vset.pattern.permute.xlu0 2
        %976 = vperm.xlu0 %975, %v778
        %v977 = vpop.permute.xlu0 %976
        %978 = vset.pattern.permute.xlu0 2
        %979 = vperm.xlu0 %978, %v779
        %v980 = vpop.permute.xlu0 %979
        %981 = vset.pattern.permute.xlu0 2
        %982 = vperm.xlu0 %981, %v780
        %v983 = vpop.permute.xlu0 %982
        %984 = vset.pattern.permute.xlu0 2
        %985 = vperm.xlu0 %984, %v781
        %v986 = vpop.permute.xlu0 %985
        %987 = vset.pattern.permute.xlu0 2
        %988 = vperm.xlu0 %987, %v782
        %v989 = vpop.permute.xlu0 %988
        %990 = vset.pattern.permute.xlu0 2
        %991 = vperm.xlu0 %990, %v783
        %v992 = vpop.permute.xlu0 %991
        %993 = vset.pattern.permute.xlu0 2
        %994 = vperm.xlu0 %993, %v784
        %v995 = vpop.permute.xlu0 %994
        %996 = vset.pattern.permute.xlu0 2
        %997 = vperm.xlu0 %996, %v785
        %v998 = vpop.permute.xlu0 %997
        %999 = vset.pattern.permute.xlu0 2
        %1000 = vperm.xlu0 %999, %v786
        %v1001 = vpop.permute.xlu0 %1000
        %1002 = vset.pattern.permute.xlu0 2
        %1003 = vperm.xlu0 %1002, %v787
        %v1004 = vpop.permute.xlu0 %1003
        %1005 = vset.pattern.permute.xlu0 2
        %1006 = vperm.xlu0 %1005, %v788
        %v1007 = vpop.permute.xlu0 %1006
        %1008 = vset.pattern.permute.xlu0 2
        %1009 = vperm.xlu0 %1008, %v789
        %v1010 = vpop.permute.xlu0 %1009
        %1011 = vset.pattern.permute.xlu0 2
        %1012 = vperm.xlu0 %1011, %v790
        %v1013 = vpop.permute.xlu0 %1012
        %1014 = vset.pattern.permute.xlu0 2
        %1015 = vperm.xlu0 %1014, %v791
        %v1016 = vpop.permute.xlu0 %1015
        %v1017 = vperm.slane %v971, %v841
        %v1018 = vperm.slane %v974, %v843
        %v1019 = vsel %vm845, %v1018, %v1017
        %v1020 = vperm.slane %v977, %v841
        %v1021 = vperm.slane %v980, %v843
        %v1022 = vsel %vm845, %v1021, %v1020
        %v1023 = vperm.slane %v983, %v841
        %v1024 = vperm.slane %v986, %v843
        %v1025 = vsel %vm845, %v1024, %v1023
        %v1026 = vperm.slane %v989, %v841
        %v1027 = vperm.slane %v992, %v843
        %v1028 = vsel %vm845, %v1027, %v1026
        %v1029 = vperm.slane %v995, %v841
        %v1030 = vperm.slane %v998, %v843
        %v1031 = vsel %vm845, %v1030, %v1029
        %v1032 = vperm.slane %v1001, %v841
        %v1033 = vperm.slane %v1004, %v843
        %v1034 = vsel %vm845, %v1033, %v1032
        %v1035 = vperm.slane %v1007, %v841
        %v1036 = vperm.slane %v1010, %v843
        %v1037 = vsel %vm845, %v1036, %v1035
        %v1038 = vperm.slane %v1013, %v841
        %v1039 = vperm.slane %v1016, %v843
        %v1040 = vsel %vm845, %v1039, %v1038
        %v1041 = vsel %vm868, %v1022, %v1019
        %v1042 = vsel %vm870, %v1025, %v1041
        %v1043 = vsel %vm872, %v1028, %v1042
        %v1044 = vsel %vm874, %v1031, %v1043
        %v1045 = vsel %vm876, %v1034, %v1044
        %v1046 = vsel %vm878, %v1037, %v1045
        %v1047 = vsel %vm880, %v1040, %v1046
        %v1048 = vpack.c.b16 %v1047, %v1047
        %s1050 = scalar_lea.vmem %s236, 8 [#allocation5]
        %1051 = vst.msk [vmem:[%s1050] sm:$0xf] %vm884, %v1048
        %1052 = vset.pattern.permute.xlu0 3
        %1053 = vperm.xlu0 %1052, %v776
        %v1054 = vpop.permute.xlu0 %1053
        %1055 = vset.pattern.permute.xlu0 3
        %1056 = vperm.xlu0 %1055, %v777
        %v1057 = vpop.permute.xlu0 %1056
        %1058 = vset.pattern.permute.xlu0 3
        %1059 = vperm.xlu0 %1058, %v778
        %v1060 = vpop.permute.xlu0 %1059
        %1061 = vset.pattern.permute.xlu0 3
        %1062 = vperm.xlu0 %1061, %v779
        %v1063 = vpop.permute.xlu0 %1062
        %1064 = vset.pattern.permute.xlu0 3
        %1065 = vperm.xlu0 %1064, %v780
        %v1066 = vpop.permute.xlu0 %1065
        %1067 = vset.pattern.permute.xlu0 3
        %1068 = vperm.xlu0 %1067, %v781
        %v1069 = vpop.permute.xlu0 %1068
        %1070 = vset.pattern.permute.xlu0 3
        %1071 = vperm.xlu0 %1070, %v782
        %v1072 = vpop.permute.xlu0 %1071
        %1073 = vset.pattern.permute.xlu0 3
        %1074 = vperm.xlu0 %1073, %v783
        %v1075 = vpop.permute.xlu0 %1074
        %1076 = vset.pattern.permute.xlu0 3
        %1077 = vperm.xlu0 %1076, %v784
        %v1078 = vpop.permute.xlu0 %1077
        %1079 = vset.pattern.permute.xlu0 3
        %1080 = vperm.xlu0 %1079, %v785
        %v1081 = vpop.permute.xlu0 %1080
        %1082 = vset.pattern.permute.xlu0 3
        %1083 = vperm.xlu0 %1082, %v786
        %v1084 = vpop.permute.xlu0 %1083
        %1085 = vset.pattern.permute.xlu0 3
        %1086 = vperm.xlu0 %1085, %v787
        %v1087 = vpop.permute.xlu0 %1086
        %1088 = vset.pattern.permute.xlu0 3
        %1089 = vperm.xlu0 %1088, %v788
        %v1090 = vpop.permute.xlu0 %1089
        %1091 = vset.pattern.permute.xlu0 3
        %1092 = vperm.xlu0 %1091, %v789
        %v1093 = vpop.permute.xlu0 %1092
        %1094 = vset.pattern.permute.xlu0 3
        %1095 = vperm.xlu0 %1094, %v790
        %v1096 = vpop.permute.xlu0 %1095
        %1097 = vset.pattern.permute.xlu0 3
        %1098 = vperm.xlu0 %1097, %v791
        %v1099 = vpop.permute.xlu0 %1098
        %v1100 = vperm.slane %v1054, %v841
        %v1101 = vperm.slane %v1057, %v843
        %v1102 = vsel %vm845, %v1101, %v1100
        %v1103 = vperm.slane %v1060, %v841
        %v1104 = vperm.slane %v1063, %v843
        %v1105 = vsel %vm845, %v1104, %v1103
        %v1106 = vperm.slane %v1066, %v841
        %v1107 = vperm.slane %v1069, %v843
        %v1108 = vsel %vm845, %v1107, %v1106
        %v1109 = vperm.slane %v1072, %v841
        %v1110 = vperm.slane %v1075, %v843
        %v1111 = vsel %vm845, %v1110, %v1109
        %v1112 = vperm.slane %v1078, %v841
        %v1113 = vperm.slane %v1081, %v843
        %v1114 = vsel %vm845, %v1113, %v1112
        %v1115 = vperm.slane %v1084, %v841
        %v1116 = vperm.slane %v1087, %v843
        %v1117 = vsel %vm845, %v1116, %v1115
        %v1118 = vperm.slane %v1090, %v841
        %v1119 = vperm.slane %v1093, %v843
        %v1120 = vsel %vm845, %v1119, %v1118
        %v1121 = vperm.slane %v1096, %v841
        %v1122 = vperm.slane %v1099, %v843
        %v1123 = vsel %vm845, %v1122, %v1121
        %v1124 = vsel %vm868, %v1105, %v1102
        %v1125 = vsel %vm870, %v1108, %v1124
        %v1126 = vsel %vm872, %v1111, %v1125
        %v1127 = vsel %vm874, %v1114, %v1126
        %v1128 = vsel %vm876, %v1117, %v1127
        %v1129 = vsel %vm878, %v1120, %v1128
        %v1130 = vsel %vm880, %v1123, %v1129
        %v1131 = vpack.c.b16 %v1130, %v1130
        %s1133 = scalar_lea.vmem %s236, 12 [#allocation5]
        %1134 = vst.msk [vmem:[%s1133] sm:$0xf] %vm884, %v1131
        %s1135 = sand.u32 %s134, 1
        %s1136 = scalar_lea.sflag [#allocation4], %s1135
        %s1137 = sand.u32 %s134, 1
        %s1138 = smul.addr %s1137, 16
        %s1139 = scalar_lea.vmem [#allocation5], %s1138
        // Predicated region
        $region41: #{tpu_custom_call.1} parent=35 // pred_check
          %p1140 = pneg %p144
        $region42: #{tpu_custom_call.1} parent=35 // pred_check_branch
          %1142 = sbr.rel (%p1140) target = $region44
        $region43: #{tpu_custom_call.1} parent=35 // pred_region
          %1144 = vsyncadd %s1136, 0
          %s1145 = smul.addr %s25, 8
          %s1146 = sadd.s32 %s26, %s1145
          %s1147 = smul.addr %s1146, 4
          %s1148 = scalar_lea.hbm %s4, %s1147
          %s1149 = sshll.u32 %s1139, 4
          %s1150 = int_to_ptr.vmem [resolvable:$true] %s1149
          %s1151 = sshll.u32 %s1148, 4
          %s1152 = int_to_ptr.hbm [resolvable:$true] %s1151
          %1157 = dma.vmem_to_hbm [thread:$0]  %s1150, 256, %s1152, %s1136, 64, 128, 4
        $region44: #{tpu_custom_call.1} parent=35 // pred_fallthru
          _
      $region36: #{tpu_custom_call.1} parent=5 // pred_fallthru
        _
      %p1158 = scmp.le.s32.totalorder 2, %s16
      // Predicated region
      $region45: #{tpu_custom_call.1} parent=5 // pred_check
        %p1159 = pneg %p1158
      $region46: #{tpu_custom_call.1} parent=5 // pred_check_branch
        %1161 = sbr.rel (%p1159) target = $region48
      $region47: #{tpu_custom_call.1} parent=5 // pred_region
        %s1162 = ssub.s32 %s16, 2
        // Predicated region
        $region49: #{tpu_custom_call.1} parent=47 // pred_check
          %p1163 = pneg %p150
        $region50: #{tpu_custom_call.1} parent=47 // pred_check_branch
          %1165 = sbr.rel (%p1163) target = $region52
        $region51: #{tpu_custom_call.1} parent=47 // pred_region
          %s1166 = sand.u32 %s135, 1
          %s1167 = scalar_lea.sflag [#allocation4], %s1166
          %s1168 = sand.u32 %s135, 1
          %s1169 = smul.addr %s1168, 16
          %s1170 = scalar_lea.vmem [#allocation5], %s1169
          %1172 = dma.done %s1167, 256
        $region52: #{tpu_custom_call.1} parent=47 // pred_fallthru
          _
      $region48: #{tpu_custom_call.1} parent=5 // pred_fallthru
        _
    $region6: #{tpu_custom_call.1} parent=1 // loop_footer
      %s20 = sadd.s32 1, %s16
    $region7: #{tpu_custom_call.1} parent=1 // loop_footer_branch
      %15 = sbr.rel target = $region3
    $region8: #{tpu_custom_call.1} parent=1 // loop_exit
      _
    %1173 = vsyncpa [#allocation3], 1
    %s1174 = scalar_lea.sflag [#allocation3], 1
    %1175 = vsyncpa %s1174, 1
    %1176 = vsyncpa [#allocation4], 1
    %s1177 = scalar_lea.sflag [#allocation4], 1
    %1178 = vsyncpa %s1177, 1

</llo_original>
